<compile_context>
chip_gen: v7x
topology: tpu7x:2x2x1
jax: 0.10.0
libtpu: 0.0.40
codegen_flags: <defaults>
</compile_context>

<pallas_src>
import functools

import jax
import jax.numpy as jnp
from jax.experimental import pallas as pl
from jax.experimental.pallas import tpu as pltpu

# ---- small LLaMA/SmolLM-style config ----
VOCAB = 96
HIDDEN = 64
N_HEADS = 2
HEAD_DIM = HIDDEN // N_HEADS
INTERMEDIATE = 128
N_LAYERS = 2
EPS = 1e-6
ROPE_THETA = 10000.0
NEG_INF = -1e9


def _rms(x, w):
    var = jnp.mean(x * x, axis=-1, keepdims=True)
    return x * jax.lax.rsqrt(var + EPS) * w


# ---------------- fused whole-model Pallas kernel ----------------

def _decoder_stack_kernel(x_ref, am_ref, cos_ref, sin_ref, ln1_ref, wqkv_ref,
                          wo_ref, ln2_ref, wgu_ref, wd_ref, fnorm_ref, o_ref,
                          *, n_layers, n_heads, head_dim, inter):
    """One grid step == one batch row; the full layer stack runs inside."""
    S, H = x_ref.shape
    D = head_dim

    # ---- per-batch additive attention bias, built in-kernel (causal + key
    # padding).  VPU compares only; never materialized in HBM. ----
    q_pos = jax.lax.broadcasted_iota(jnp.int32, (S, S), 0)
    k_pos = jax.lax.broadcasted_iota(jnp.int32, (S, S), 1)
    key_bias = (am_ref[...] - 1.0) * (-NEG_INF)          # (1,S): 0 valid, -1e9 pad
    bias = jnp.where(k_pos <= q_pos, key_bias, NEG_INF)  # (S,S)

    cos = cos_ref[...]                                   # (S, D) full-width table
    sin = sin_ref[...]                                   # (S, D)
    x = x_ref[...]                                       # (S, H) activations

    for l in range(n_layers):          # unrolled; weights are resident in VMEM
        # ---- self-attention: fused [q | q_rot | k | k_rot | v] matmul ----
        h = _rms(x, ln1_ref[l])
        qkvr = jnp.dot(h, wqkv_ref[l],
                       preferred_element_type=jnp.float32)          # (S, 5H)
        wo_l = wo_ref[l]                                             # (H, H)

        attn = jnp.zeros_like(x)
        for hd in range(n_heads):
            c = hd * D
            # RoPE = two full-width FMAs (rotate_half folded into weights,
            # score scale folded into the q columns at init).
            q = qkvr[:, c:c + D] * cos + qkvr[:, H + c:H + c + D] * sin
            k = (qkvr[:, 2 * H + c:2 * H + c + D] * cos
                 + qkvr[:, 3 * H + c:3 * H + c + D] * sin)
            v = qkvr[:, 4 * H + c:4 * H + c + D]

            s = jax.lax.dot_general(q, k, (((1,), (1,)), ((), ())),
                                    preferred_element_type=jnp.float32)
            s = s + bias
            p = jnp.exp(s - jnp.max(s, axis=-1, keepdims=True))
            p = p / jnp.sum(p, axis=-1, keepdims=True)   # exact softmax (HF parity)
            o_h = jnp.dot(p, v, preferred_element_type=jnp.float32)  # (S, D)
            # no head concat: project through this head's rows of W_o.
            attn = attn + jnp.dot(o_h, wo_l[c:c + D, :],
                                  preferred_element_type=jnp.float32)
        x = x + attn

        # ---- SwiGLU MLP: fused gate/up projection ----
        h2 = _rms(x, ln2_ref[l])
        gu = jnp.dot(h2, wgu_ref[l], preferred_element_type=jnp.float32)  # (S,2I)
        g = gu[:, :inter]
        u = gu[:, inter:]
        x = x + jnp.dot(g * jax.nn.sigmoid(g) * u, wd_ref[l],
                        preferred_element_type=jnp.float32)

    # hidden_states[-1] == final RMSNorm of the last layer's output.
    o_ref[...] = _rms(x, fnorm_ref[...])


def transformer_pallas(x, am, cos_full, sin_full, ln1, wqkv, wo, ln2, wgu, wd,
                       fnorm):
    B, S, H = x.shape
    L = wqkv.shape[0]

    kern = functools.partial(_decoder_stack_kernel, n_layers=L,
                             n_heads=N_HEADS, head_dim=HEAD_DIM,
                             inter=INTERMEDIATE)

    def resident(arr):
        n = arr.ndim
        return pl.BlockSpec(arr.shape, lambda b, n=n: (0,) * n)

    def per_batch(shape):
        k = len(shape) - 1
        return pl.BlockSpec((None,) + shape[1:],
                            lambda b, k=k: (b,) + (0,) * k)

    return pl.pallas_call(
        kern,
        out_shape=jax.ShapeDtypeStruct((B, S, H), jnp.float32),
        grid=(B,),
        in_specs=[
            per_batch(x.shape),        # embedded tokens        (b, S, H)
            per_batch(am.shape),       # attention_mask as f32  (b, 1, S)
            resident(cos_full),        # RoPE cos, full width   (S, D)
            resident(sin_full),        # RoPE sin, full width   (S, D)
            resident(ln1),             # (L, 1, H)
            resident(wqkv),            # fused q|q_rot|k|k_rot|v  (L, H, 5H)
            resident(wo),              # (L, H, H)
            resident(ln2),             # (L, 1, H)
            resident(wgu),             # fused gate|up          (L, H, 2I)
            resident(wd),              # (L, I, H)
            resident(fnorm),           # (1, H)
        ],
        out_specs=per_batch((B, S, H)),
        compiler_params=pltpu.CompilerParams(
            dimension_semantics=("parallel",)),
    )(x, am, cos_full, sin_full, ln1, wqkv, wo, ln2, wgu, wd, fnorm)


# ---------------- plain-JAX glue ----------------

def init_params(key):
    keys = jax.random.split(key, 1 + N_LAYERS * 7)
    scale = 1.0 / (HEAD_DIM ** 0.5)
    half = HEAD_DIM // 2

    def w(k, shape):
        return 0.02 * jax.random.normal(k, shape, dtype=jnp.float32)

    def rot_cols(m):
        # rotate_half folded into output columns: per head, the output column
        # block becomes [-cols(half:), cols(:half)].
        m4 = m.reshape(m.shape[0], N_HEADS, 2, half)
        return jnp.concatenate([-m4[:, :, 1:2, :], m4[:, :, 0:1, :]],
                               axis=2).reshape(m.shape)

    ln1, ln2, wqkv, wo, wgu, wd = [], [], [], [], [], []
    for l in range(N_LAYERS):
        k = keys[1 + l * 7: 1 + (l + 1) * 7]
        wq = w(k[0], (HIDDEN, HIDDEN)) * scale       # score scale folded in
        wk = w(k[1], (HIDDEN, HIDDEN))
        wv = w(k[2], (HIDDEN, HIDDEN))
        wqkv.append(jnp.concatenate(
            [wq, rot_cols(wq), wk, rot_cols(wk), wv], axis=1))       # (H, 5H)
        wo.append(w(k[3], (HIDDEN, HIDDEN)))
        wgu.append(jnp.concatenate(
            [w(k[4], (HIDDEN, INTERMEDIATE)),
             w(k[5], (HIDDEN, INTERMEDIATE))], axis=1))              # (H, 2I)
        wd.append(w(k[6], (INTERMEDIATE, HIDDEN)))
        ln1.append(jnp.ones((1, HIDDEN), jnp.float32))
        ln2.append(jnp.ones((1, HIDDEN), jnp.float32))

    return {
        "embed": w(keys[0], (VOCAB, HIDDEN)),
        "final_norm": jnp.ones((1, HIDDEN), jnp.float32),
        "ln1": jnp.stack(ln1), "ln2": jnp.stack(ln2),
        "wqkv": jnp.stack(wqkv), "wo": jnp.stack(wo),
        "wgu": jnp.stack(wgu), "wd": jnp.stack(wd),
    }


def model_wrapper_forward(params, input_ids, attention_mask):
    """Equivalent of ModelWrapper.forward: returns hidden_states[-1] (B,S,H)."""
    B, S = input_ids.shape

    # Embedding gather stays in plain JAX (no clean tiny-Pallas equivalent).
    x = jnp.take(params["embed"], input_ids, axis=0)                 # (B,S,H)

    # Full-width (S, head_dim) RoPE tables (HF Llama convention).
    inv_freq = 1.0 / (ROPE_THETA ** (
        jnp.arange(0, HEAD_DIM, 2, dtype=jnp.float32) / HEAD_DIM))
    freqs = jnp.outer(jnp.arange(S, dtype=jnp.float32), inv_freq)    # (S, D/2)
    cos_full = jnp.concatenate([jnp.cos(freqs)] * 2, axis=-1)        # (S, D)
    sin_full = jnp.concatenate([jnp.sin(freqs)] * 2, axis=-1)        # (S, D)

    # O(B*S) key-validity input; causal structure is rebuilt inside the kernel.
    am = attention_mask.astype(jnp.float32).reshape(B, 1, S)

    return transformer_pallas(
        x, am, cos_full, sin_full, params["ln1"], params["wqkv"], params["wo"],
        params["ln2"], params["wgu"], params["wd"], params["final_norm"])


if __name__ == "__main__":
    B, S = 2, 8
    key = jax.random.PRNGKey(0)
    pkey, ikey = jax.random.split(key)
    params = init_params(pkey)
    input_ids = jax.random.randint(ikey, (B, S), 0, VOCAB, dtype=jnp.int32)
    attention_mask = jnp.ones((B, S), dtype=jnp.int32).at[1, -2:].set(0)

    fwd = jax.jit(model_wrapper_forward)
    out = fwd(params, input_ids, attention_mask)
    out = jax.block_until_ready(out)

    assert out.shape == (B, S, HIDDEN), out.shape
    assert bool(jnp.all(jnp.isfinite(out)))
    print("KERNEL_OK")
</pallas_src>

<mosaic_0001>
module attributes {stable_mosaic.version = 11 : i64} {
  func.func @_decoder_stack_kernel(%arg0: i32, %arg1: memref<1x8x64xf32, #tpu.memory_space<vmem>>, %arg2: memref<1x1x8xf32, #tpu.memory_space<vmem>>, %arg3: memref<8x32xf32, #tpu.memory_space<vmem>>, %arg4: memref<8x32xf32, #tpu.memory_space<vmem>>, %arg5: memref<2x1x64xf32, #tpu.memory_space<vmem>>, %arg6: memref<2x64x320xf32, #tpu.memory_space<vmem>>, %arg7: memref<2x64x64xf32, #tpu.memory_space<vmem>>, %arg8: memref<2x1x64xf32, #tpu.memory_space<vmem>>, %arg9: memref<2x64x256xf32, #tpu.memory_space<vmem>>, %arg10: memref<2x128x64xf32, #tpu.memory_space<vmem>>, %arg11: memref<1x64xf32, #tpu.memory_space<vmem>>, %arg12: memref<1x8x64xf32, #tpu.memory_space<vmem>>) attributes {dimension_semantics = [#tpu.dimension_semantics<parallel>], iteration_bounds = array<i64: 2>, scalar_prefetch = 0 : i64, scratch_operands = 0 : i64, tpu.core_type = #tpu.core_type<tc>, window_params = [{transform_indices = @transform_0, window_bounds = array<i64: 1, 8, 64>}, {transform_indices = @transform_1, window_bounds = array<i64: 1, 1, 8>}, {pipeline_mode = #tpu.pipeline_mode<synchronous>, transform_indices = @transform_2, window_bounds = array<i64: 8, 32>}, {pipeline_mode = #tpu.pipeline_mode<synchronous>, transform_indices = @transform_3, window_bounds = array<i64: 8, 32>}, {pipeline_mode = #tpu.pipeline_mode<synchronous>, transform_indices = @transform_4, window_bounds = array<i64: 2, 1, 64>}, {pipeline_mode = #tpu.pipeline_mode<synchronous>, transform_indices = @transform_5, window_bounds = array<i64: 2, 64, 320>}, {pipeline_mode = #tpu.pipeline_mode<synchronous>, transform_indices = @transform_6, window_bounds = array<i64: 2, 64, 64>}, {pipeline_mode = #tpu.pipeline_mode<synchronous>, transform_indices = @transform_7, window_bounds = array<i64: 2, 1, 64>}, {pipeline_mode = #tpu.pipeline_mode<synchronous>, transform_indices = @transform_8, window_bounds = array<i64: 2, 64, 256>}, {pipeline_mode = #tpu.pipeline_mode<synchronous>, transform_indices = @transform_9, window_bounds = array<i64: 2, 128, 64>}, {pipeline_mode = #tpu.pipeline_mode<synchronous>, transform_indices = @transform_10, window_bounds = array<i64: 1, 64>}, {transform_indices = @transform_11, window_bounds = array<i64: 1, 8, 64>}]} {
    %0 = tpu.iota {dimensions = array<i32: 0>} : vector<8x8xi32>
    %1 = tpu.iota {dimensions = array<i32: 1>} : vector<8x8xi32>
    %c0 = arith.constant 0 : index
    %c0_0 = arith.constant 0 : index
    %c0_1 = arith.constant 0 : index
    %2 = vector.load %arg2[%c0, %c0_0, %c0_1] : memref<1x1x8xf32, #tpu.memory_space<vmem>>, vector<1x1x8xf32>
    %3 = vector.shape_cast %2 : vector<1x1x8xf32> to vector<1x8xf32>
    %cst = arith.constant 1.000000e+00 : f32
    %4 = vector.broadcast %cst : f32 to vector<1x8xf32>
    %5 = arith.subf %3, %4 : vector<1x8xf32>
    %cst_2 = arith.constant 1.000000e+09 : f32
    %6 = vector.broadcast %cst_2 : f32 to vector<1x8xf32>
    %7 = arith.mulf %5, %6 : vector<1x8xf32>
    %8 = arith.cmpi sle, %1, %0 : vector<8x8xi32>
    %cst_3 = arith.constant -1.000000e+09 : f32
    %9 = vector.shape_cast %7 : vector<1x8xf32> to vector<1x8xf32>
    %10 = vector.broadcast %9 : vector<1x8xf32> to vector<8x8xf32>
    %11 = vector.broadcast %cst_3 : f32 to vector<8x8xf32>
    %12 = arith.select %8, %10, %11 : vector<8x8xi1>, vector<8x8xf32>
    %c0_4 = arith.constant 0 : index
    %c0_5 = arith.constant 0 : index
    %13 = vector.load %arg3[%c0_4, %c0_5] : memref<8x32xf32, #tpu.memory_space<vmem>>, vector<8x32xf32>
    %c0_6 = arith.constant 0 : index
    %c0_7 = arith.constant 0 : index
    %14 = vector.load %arg4[%c0_6, %c0_7] : memref<8x32xf32, #tpu.memory_space<vmem>>, vector<8x32xf32>
    %c0_8 = arith.constant 0 : index
    %c0_9 = arith.constant 0 : index
    %c0_10 = arith.constant 0 : index
    %15 = vector.load %arg1[%c0_8, %c0_9, %c0_10] : memref<1x8x64xf32, #tpu.memory_space<vmem>>, vector<1x8x64xf32>
    %16 = vector.shape_cast %15 : vector<1x8x64xf32> to vector<8x64xf32>
    %c0_11 = arith.constant 0 : index
    %c0_12 = arith.constant 0 : index
    %c0_13 = arith.constant 0 : index
    %17 = vector.load %arg5[%c0_11, %c0_12, %c0_13] : memref<2x1x64xf32, #tpu.memory_space<vmem>>, vector<1x1x64xf32>
    %18 = vector.shape_cast %17 : vector<1x1x64xf32> to vector<1x64xf32>
    %19 = arith.mulf %16, %16 : vector<8x64xf32>
    %cst_14 = arith.constant dense<0.000000e+00> : vector<8xf32>
    %20 = vector.multi_reduction <add>, %19, %cst_14 [1] : vector<8x64xf32> to vector<8xf32>
    %21 = vector.shape_cast %20 : vector<8xf32> to vector<8x1xf32>
    %cst_15 = arith.constant 6.400000e+01 : f32
    %22 = vector.broadcast %cst_15 : f32 to vector<8x1xf32>
    %23 = arith.divf %21, %22 : vector<8x1xf32>
    %cst_16 = arith.constant 9.99999997E-7 : f32
    %24 = vector.broadcast %cst_16 : f32 to vector<8x1xf32>
    %25 = arith.addf %23, %24 : vector<8x1xf32>
    %26 = math.rsqrt %25 : vector<8x1xf32>
    %27 = vector.broadcast %26 : vector<8x1xf32> to vector<8x64xf32>
    %28 = arith.mulf %16, %27 : vector<8x64xf32>
    %29 = vector.broadcast %18 : vector<1x64xf32> to vector<8x64xf32>
    %30 = arith.mulf %28, %29 : vector<8x64xf32>
    %c0_17 = arith.constant 0 : index
    %c0_18 = arith.constant 0 : index
    %c0_19 = arith.constant 0 : index
    %31 = vector.load %arg6[%c0_17, %c0_18, %c0_19] : memref<2x64x320xf32, #tpu.memory_space<vmem>>, vector<1x64x320xf32>
    %32 = vector.shape_cast %31 : vector<1x64x320xf32> to vector<64x320xf32>
    %cst_20 = arith.constant dense<0.000000e+00> : vector<8x320xf32>
    %33 = tpu.matmul %30, %32, %cst_20 {dimension_numbers = #tpu.dot_dimension_numbers<[1], [0], [0], [1], [0, 0, 1, 1], [], []>} : vector<8x64xf32>, vector<64x320xf32>, vector<8x320xf32> -> vector<8x320xf32>
    %c0_21 = arith.constant 0 : index
    %c0_22 = arith.constant 0 : index
    %c0_23 = arith.constant 0 : index
    %34 = vector.load %arg7[%c0_21, %c0_22, %c0_23] : memref<2x64x64xf32, #tpu.memory_space<vmem>>, vector<1x64x64xf32>
    %35 = vector.shape_cast %34 : vector<1x64x64xf32> to vector<64x64xf32>
    %cst_24 = arith.constant 0.000000e+00 : f32
    %36 = vector.broadcast %cst_24 : f32 to vector<8x64xf32>
    %37 = vector.extract_strided_slice %33 {offsets = [0, 0], sizes = [8, 32], strides = [1, 1]} : vector<8x320xf32> to vector<8x32xf32>
    %38 = arith.mulf %37, %13 : vector<8x32xf32>
    %39 = vector.extract_strided_slice %33 {offsets = [0, 64], sizes = [8, 32], strides = [1, 1]} : vector<8x320xf32> to vector<8x32xf32>
    %40 = arith.mulf %39, %14 : vector<8x32xf32>
    %41 = arith.addf %38, %40 : vector<8x32xf32>
    %42 = vector.extract_strided_slice %33 {offsets = [0, 128], sizes = [8, 32], strides = [1, 1]} : vector<8x320xf32> to vector<8x32xf32>
    %43 = arith.mulf %42, %13 : vector<8x32xf32>
    %44 = vector.extract_strided_slice %33 {offsets = [0, 192], sizes = [8, 32], strides = [1, 1]} : vector<8x320xf32> to vector<8x32xf32>
    %45 = arith.mulf %44, %14 : vector<8x32xf32>
    %46 = arith.addf %43, %45 : vector<8x32xf32>
    %47 = vector.extract_strided_slice %33 {offsets = [0, 256], sizes = [8, 32], strides = [1, 1]} : vector<8x320xf32> to vector<8x32xf32>
    %cst_25 = arith.constant dense<0.000000e+00> : vector<8x8xf32>
    %48 = tpu.matmul %41, %46, %cst_25 {dimension_numbers = #tpu.dot_dimension_numbers<[1], [1], [0], [0], [0, 0, 1, 0], [], []>} : vector<8x32xf32>, vector<8x32xf32>, vector<8x8xf32> -> vector<8x8xf32>
    %49 = arith.addf %48, %12 : vector<8x8xf32>
    %cst_26 = arith.constant dense<0xFF800000> : vector<8xf32>
    %50 = vector.multi_reduction <maximumf>, %49, %cst_26 [1] : vector<8x8xf32> to vector<8xf32>
    %51 = vector.shape_cast %50 : vector<8xf32> to vector<8x1xf32>
    %52 = vector.broadcast %51 : vector<8x1xf32> to vector<8x8xf32>
    %53 = arith.subf %49, %52 : vector<8x8xf32>
    %54 = math.exp %53 : vector<8x8xf32>
    %cst_27 = arith.constant dense<0.000000e+00> : vector<8xf32>
    %55 = vector.multi_reduction <add>, %54, %cst_27 [1] : vector<8x8xf32> to vector<8xf32>
    %56 = vector.shape_cast %55 : vector<8xf32> to vector<8x1xf32>
    %57 = vector.broadcast %56 : vector<8x1xf32> to vector<8x8xf32>
    %58 = arith.divf %54, %57 : vector<8x8xf32>
    %cst_28 = arith.constant dense<0.000000e+00> : vector<8x32xf32>
    %59 = tpu.matmul %58, %47, %cst_28 {dimension_numbers = #tpu.dot_dimension_numbers<[1], [0], [0], [1], [0, 0, 1, 1], [], []>} : vector<8x8xf32>, vector<8x32xf32>, vector<8x32xf32> -> vector<8x32xf32>
    %60 = vector.extract_strided_slice %35 {offsets = [0, 0], sizes = [32, 64], strides = [1, 1]} : vector<64x64xf32> to vector<32x64xf32>
    %cst_29 = arith.constant dense<0.000000e+00> : vector<8x64xf32>
    %61 = tpu.matmul %59, %60, %cst_29 {dimension_numbers = #tpu.dot_dimension_numbers<[1], [0], [0], [1], [0, 0, 1, 1], [], []>} : vector<8x32xf32>, vector<32x64xf32>, vector<8x64xf32> -> vector<8x64xf32>
    %62 = arith.addf %36, %61 : vector<8x64xf32>
    %63 = vector.extract_strided_slice %33 {offsets = [0, 32], sizes = [8, 32], strides = [1, 1]} : vector<8x320xf32> to vector<8x32xf32>
    %64 = arith.mulf %63, %13 : vector<8x32xf32>
    %65 = vector.extract_strided_slice %33 {offsets = [0, 96], sizes = [8, 32], strides = [1, 1]} : vector<8x320xf32> to vector<8x32xf32>
    %66 = arith.mulf %65, %14 : vector<8x32xf32>
    %67 = arith.addf %64, %66 : vector<8x32xf32>
    %68 = vector.extract_strided_slice %33 {offsets = [0, 160], sizes = [8, 32], strides = [1, 1]} : vector<8x320xf32> to vector<8x32xf32>
    %69 = arith.mulf %68, %13 : vector<8x32xf32>
    %70 = vector.extract_strided_slice %33 {offsets = [0, 224], sizes = [8, 32], strides = [1, 1]} : vector<8x320xf32> to vector<8x32xf32>
    %71 = arith.mulf %70, %14 : vector<8x32xf32>
    %72 = arith.addf %69, %71 : vector<8x32xf32>
    %73 = vector.extract_strided_slice %33 {offsets = [0, 288], sizes = [8, 32], strides = [1, 1]} : vector<8x320xf32> to vector<8x32xf32>
    %cst_30 = arith.constant dense<0.000000e+00> : vector<8x8xf32>
    %74 = tpu.matmul %67, %72, %cst_30 {dimension_numbers = #tpu.dot_dimension_numbers<[1], [1], [0], [0], [0, 0, 1, 0], [], []>} : vector<8x32xf32>, vector<8x32xf32>, vector<8x8xf32> -> vector<8x8xf32>
    %75 = arith.addf %74, %12 : vector<8x8xf32>
    %cst_31 = arith.constant dense<0xFF800000> : vector<8xf32>
    %76 = vector.multi_reduction <maximumf>, %75, %cst_31 [1] : vector<8x8xf32> to vector<8xf32>
    %77 = vector.shape_cast %76 : vector<8xf32> to vector<8x1xf32>
    %78 = vector.broadcast %77 : vector<8x1xf32> to vector<8x8xf32>
    %79 = arith.subf %75, %78 : vector<8x8xf32>
    %80 = math.exp %79 : vector<8x8xf32>
    %cst_32 = arith.constant dense<0.000000e+00> : vector<8xf32>
    %81 = vector.multi_reduction <add>, %80, %cst_32 [1] : vector<8x8xf32> to vector<8xf32>
    %82 = vector.shape_cast %81 : vector<8xf32> to vector<8x1xf32>
    %83 = vector.broadcast %82 : vector<8x1xf32> to vector<8x8xf32>
    %84 = arith.divf %80, %83 : vector<8x8xf32>
    %cst_33 = arith.constant dense<0.000000e+00> : vector<8x32xf32>
    %85 = tpu.matmul %84, %73, %cst_33 {dimension_numbers = #tpu.dot_dimension_numbers<[1], [0], [0], [1], [0, 0, 1, 1], [], []>} : vector<8x8xf32>, vector<8x32xf32>, vector<8x32xf32> -> vector<8x32xf32>
    %86 = vector.extract_strided_slice %35 {offsets = [32, 0], sizes = [32, 64], strides = [1, 1]} : vector<64x64xf32> to vector<32x64xf32>
    %cst_34 = arith.constant dense<0.000000e+00> : vector<8x64xf32>
    %87 = tpu.matmul %85, %86, %cst_34 {dimension_numbers = #tpu.dot_dimension_numbers<[1], [0], [0], [1], [0, 0, 1, 1], [], []>} : vector<8x32xf32>, vector<32x64xf32>, vector<8x64xf32> -> vector<8x64xf32>
    %88 = arith.addf %62, %87 : vector<8x64xf32>
    %89 = arith.addf %16, %88 : vector<8x64xf32>
    %c0_35 = arith.constant 0 : index
    %c0_36 = arith.constant 0 : index
    %c0_37 = arith.constant 0 : index
    %90 = vector.load %arg8[%c0_35, %c0_36, %c0_37] : memref<2x1x64xf32, #tpu.memory_space<vmem>>, vector<1x1x64xf32>
    %91 = vector.shape_cast %90 : vector<1x1x64xf32> to vector<1x64xf32>
    %92 = arith.mulf %89, %89 : vector<8x64xf32>
    %cst_38 = arith.constant dense<0.000000e+00> : vector<8xf32>
    %93 = vector.multi_reduction <add>, %92, %cst_38 [1] : vector<8x64xf32> to vector<8xf32>
    %94 = vector.shape_cast %93 : vector<8xf32> to vector<8x1xf32>
    %cst_39 = arith.constant 6.400000e+01 : f32
    %95 = vector.broadcast %cst_39 : f32 to vector<8x1xf32>
    %96 = arith.divf %94, %95 : vector<8x1xf32>
    %cst_40 = arith.constant 9.99999997E-7 : f32
    %97 = vector.broadcast %cst_40 : f32 to vector<8x1xf32>
    %98 = arith.addf %96, %97 : vector<8x1xf32>
    %99 = math.rsqrt %98 : vector<8x1xf32>
    %100 = vector.broadcast %99 : vector<8x1xf32> to vector<8x64xf32>
    %101 = arith.mulf %89, %100 : vector<8x64xf32>
    %102 = vector.broadcast %91 : vector<1x64xf32> to vector<8x64xf32>
    %103 = arith.mulf %101, %102 : vector<8x64xf32>
    %c0_41 = arith.constant 0 : index
    %c0_42 = arith.constant 0 : index
    %c0_43 = arith.constant 0 : index
    %104 = vector.load %arg9[%c0_41, %c0_42, %c0_43] : memref<2x64x256xf32, #tpu.memory_space<vmem>>, vector<1x64x256xf32>
    %105 = vector.shape_cast %104 : vector<1x64x256xf32> to vector<64x256xf32>
    %cst_44 = arith.constant dense<0.000000e+00> : vector<8x256xf32>
    %106 = tpu.matmul %103, %105, %cst_44 {dimension_numbers = #tpu.dot_dimension_numbers<[1], [0], [0], [1], [0, 0, 1, 1], [], []>} : vector<8x64xf32>, vector<64x256xf32>, vector<8x256xf32> -> vector<8x256xf32>
    %107 = vector.extract_strided_slice %106 {offsets = [0, 0], sizes = [8, 128], strides = [1, 1]} : vector<8x256xf32> to vector<8x128xf32>
    %108 = vector.extract_strided_slice %106 {offsets = [0, 128], sizes = [8, 128], strides = [1, 1]} : vector<8x256xf32> to vector<8x128xf32>
    %109 = arith.negf %107 : vector<8x128xf32>
    %110 = math.exp %109 : vector<8x128xf32>
    %cst_45 = arith.constant 1.000000e+00 : f32
    %111 = vector.broadcast %cst_45 : f32 to vector<8x128xf32>
    %112 = arith.addf %111, %110 : vector<8x128xf32>
    %113 = arith.divf %111, %112 : vector<8x128xf32>
    %114 = arith.mulf %107, %113 : vector<8x128xf32>
    %115 = arith.mulf %114, %108 : vector<8x128xf32>
    %c0_46 = arith.constant 0 : index
    %c0_47 = arith.constant 0 : index
    %c0_48 = arith.constant 0 : index
    %116 = vector.load %arg10[%c0_46, %c0_47, %c0_48] : memref<2x128x64xf32, #tpu.memory_space<vmem>>, vector<1x128x64xf32>
    %117 = vector.shape_cast %116 : vector<1x128x64xf32> to vector<128x64xf32>
    %cst_49 = arith.constant dense<0.000000e+00> : vector<8x64xf32>
    %118 = tpu.matmul %115, %117, %cst_49 {dimension_numbers = #tpu.dot_dimension_numbers<[1], [0], [0], [1], [0, 0, 1, 1], [], []>} : vector<8x128xf32>, vector<128x64xf32>, vector<8x64xf32> -> vector<8x64xf32>
    %119 = arith.addf %89, %118 : vector<8x64xf32>
    %c1 = arith.constant 1 : index
    %c0_50 = arith.constant 0 : index
    %c0_51 = arith.constant 0 : index
    %120 = vector.load %arg5[%c1, %c0_50, %c0_51] : memref<2x1x64xf32, #tpu.memory_space<vmem>>, vector<1x1x64xf32>
    %121 = vector.shape_cast %120 : vector<1x1x64xf32> to vector<1x64xf32>
    %122 = arith.mulf %119, %119 : vector<8x64xf32>
    %cst_52 = arith.constant dense<0.000000e+00> : vector<8xf32>
    %123 = vector.multi_reduction <add>, %122, %cst_52 [1] : vector<8x64xf32> to vector<8xf32>
    %124 = vector.shape_cast %123 : vector<8xf32> to vector<8x1xf32>
    %cst_53 = arith.constant 6.400000e+01 : f32
    %125 = vector.broadcast %cst_53 : f32 to vector<8x1xf32>
    %126 = arith.divf %124, %125 : vector<8x1xf32>
    %cst_54 = arith.constant 9.99999997E-7 : f32
    %127 = vector.broadcast %cst_54 : f32 to vector<8x1xf32>
    %128 = arith.addf %126, %127 : vector<8x1xf32>
    %129 = math.rsqrt %128 : vector<8x1xf32>
    %130 = vector.broadcast %129 : vector<8x1xf32> to vector<8x64xf32>
    %131 = arith.mulf %119, %130 : vector<8x64xf32>
    %132 = vector.broadcast %121 : vector<1x64xf32> to vector<8x64xf32>
    %133 = arith.mulf %131, %132 : vector<8x64xf32>
    %c1_55 = arith.constant 1 : index
    %c0_56 = arith.constant 0 : index
    %c0_57 = arith.constant 0 : index
    %134 = vector.load %arg6[%c1_55, %c0_56, %c0_57] : memref<2x64x320xf32, #tpu.memory_space<vmem>>, vector<1x64x320xf32>
    %135 = vector.shape_cast %134 : vector<1x64x320xf32> to vector<64x320xf32>
    %cst_58 = arith.constant dense<0.000000e+00> : vector<8x320xf32>
    %136 = tpu.matmul %133, %135, %cst_58 {dimension_numbers = #tpu.dot_dimension_numbers<[1], [0], [0], [1], [0, 0, 1, 1], [], []>} : vector<8x64xf32>, vector<64x320xf32>, vector<8x320xf32> -> vector<8x320xf32>
    %c1_59 = arith.constant 1 : index
    %c0_60 = arith.constant 0 : index
    %c0_61 = arith.constant 0 : index
    %137 = vector.load %arg7[%c1_59, %c0_60, %c0_61] : memref<2x64x64xf32, #tpu.memory_space<vmem>>, vector<1x64x64xf32>
    %138 = vector.shape_cast %137 : vector<1x64x64xf32> to vector<64x64xf32>
    %cst_62 = arith.constant 0.000000e+00 : f32
    %139 = vector.broadcast %cst_62 : f32 to vector<8x64xf32>
    %140 = vector.extract_strided_slice %136 {offsets = [0, 0], sizes = [8, 32], strides = [1, 1]} : vector<8x320xf32> to vector<8x32xf32>
    %141 = arith.mulf %140, %13 : vector<8x32xf32>
    %142 = vector.extract_strided_slice %136 {offsets = [0, 64], sizes = [8, 32], strides = [1, 1]} : vector<8x320xf32> to vector<8x32xf32>
    %143 = arith.mulf %142, %14 : vector<8x32xf32>
    %144 = arith.addf %141, %143 : vector<8x32xf32>
    %145 = vector.extract_strided_slice %136 {offsets = [0, 128], sizes = [8, 32], strides = [1, 1]} : vector<8x320xf32> to vector<8x32xf32>
    %146 = arith.mulf %145, %13 : vector<8x32xf32>
    %147 = vector.extract_strided_slice %136 {offsets = [0, 192], sizes = [8, 32], strides = [1, 1]} : vector<8x320xf32> to vector<8x32xf32>
    %148 = arith.mulf %147, %14 : vector<8x32xf32>
    %149 = arith.addf %146, %148 : vector<8x32xf32>
    %150 = vector.extract_strided_slice %136 {offsets = [0, 256], sizes = [8, 32], strides = [1, 1]} : vector<8x320xf32> to vector<8x32xf32>
    %cst_63 = arith.constant dense<0.000000e+00> : vector<8x8xf32>
    %151 = tpu.matmul %144, %149, %cst_63 {dimension_numbers = #tpu.dot_dimension_numbers<[1], [1], [0], [0], [0, 0, 1, 0], [], []>} : vector<8x32xf32>, vector<8x32xf32>, vector<8x8xf32> -> vector<8x8xf32>
    %152 = arith.addf %151, %12 : vector<8x8xf32>
    %cst_64 = arith.constant dense<0xFF800000> : vector<8xf32>
    %153 = vector.multi_reduction <maximumf>, %152, %cst_64 [1] : vector<8x8xf32> to vector<8xf32>
    %154 = vector.shape_cast %153 : vector<8xf32> to vector<8x1xf32>
    %155 = vector.broadcast %154 : vector<8x1xf32> to vector<8x8xf32>
    %156 = arith.subf %152, %155 : vector<8x8xf32>
    %157 = math.exp %156 : vector<8x8xf32>
    %cst_65 = arith.constant dense<0.000000e+00> : vector<8xf32>
    %158 = vector.multi_reduction <add>, %157, %cst_65 [1] : vector<8x8xf32> to vector<8xf32>
    %159 = vector.shape_cast %158 : vector<8xf32> to vector<8x1xf32>
    %160 = vector.broadcast %159 : vector<8x1xf32> to vector<8x8xf32>
    %161 = arith.divf %157, %160 : vector<8x8xf32>
    %cst_66 = arith.constant dense<0.000000e+00> : vector<8x32xf32>
    %162 = tpu.matmul %161, %150, %cst_66 {dimension_numbers = #tpu.dot_dimension_numbers<[1], [0], [0], [1], [0, 0, 1, 1], [], []>} : vector<8x8xf32>, vector<8x32xf32>, vector<8x32xf32> -> vector<8x32xf32>
    %163 = vector.extract_strided_slice %138 {offsets = [0, 0], sizes = [32, 64], strides = [1, 1]} : vector<64x64xf32> to vector<32x64xf32>
    %cst_67 = arith.constant dense<0.000000e+00> : vector<8x64xf32>
    %164 = tpu.matmul %162, %163, %cst_67 {dimension_numbers = #tpu.dot_dimension_numbers<[1], [0], [0], [1], [0, 0, 1, 1], [], []>} : vector<8x32xf32>, vector<32x64xf32>, vector<8x64xf32> -> vector<8x64xf32>
    %165 = arith.addf %139, %164 : vector<8x64xf32>
    %166 = vector.extract_strided_slice %136 {offsets = [0, 32], sizes = [8, 32], strides = [1, 1]} : vector<8x320xf32> to vector<8x32xf32>
    %167 = arith.mulf %166, %13 : vector<8x32xf32>
    %168 = vector.extract_strided_slice %136 {offsets = [0, 96], sizes = [8, 32], strides = [1, 1]} : vector<8x320xf32> to vector<8x32xf32>
    %169 = arith.mulf %168, %14 : vector<8x32xf32>
    %170 = arith.addf %167, %169 : vector<8x32xf32>
    %171 = vector.extract_strided_slice %136 {offsets = [0, 160], sizes = [8, 32], strides = [1, 1]} : vector<8x320xf32> to vector<8x32xf32>
    %172 = arith.mulf %171, %13 : vector<8x32xf32>
    %173 = vector.extract_strided_slice %136 {offsets = [0, 224], sizes = [8, 32], strides = [1, 1]} : vector<8x320xf32> to vector<8x32xf32>
    %174 = arith.mulf %173, %14 : vector<8x32xf32>
    %175 = arith.addf %172, %174 : vector<8x32xf32>
    %176 = vector.extract_strided_slice %136 {offsets = [0, 288], sizes = [8, 32], strides = [1, 1]} : vector<8x320xf32> to vector<8x32xf32>
    %cst_68 = arith.constant dense<0.000000e+00> : vector<8x8xf32>
    %177 = tpu.matmul %170, %175, %cst_68 {dimension_numbers = #tpu.dot_dimension_numbers<[1], [1], [0], [0], [0, 0, 1, 0], [], []>} : vector<8x32xf32>, vector<8x32xf32>, vector<8x8xf32> -> vector<8x8xf32>
    %178 = arith.addf %177, %12 : vector<8x8xf32>
    %cst_69 = arith.constant dense<0xFF800000> : vector<8xf32>
    %179 = vector.multi_reduction <maximumf>, %178, %cst_69 [1] : vector<8x8xf32> to vector<8xf32>
    %180 = vector.shape_cast %179 : vector<8xf32> to vector<8x1xf32>
    %181 = vector.broadcast %180 : vector<8x1xf32> to vector<8x8xf32>
    %182 = arith.subf %178, %181 : vector<8x8xf32>
    %183 = math.exp %182 : vector<8x8xf32>
    %cst_70 = arith.constant dense<0.000000e+00> : vector<8xf32>
    %184 = vector.multi_reduction <add>, %183, %cst_70 [1] : vector<8x8xf32> to vector<8xf32>
    %185 = vector.shape_cast %184 : vector<8xf32> to vector<8x1xf32>
    %186 = vector.broadcast %185 : vector<8x1xf32> to vector<8x8xf32>
    %187 = arith.divf %183, %186 : vector<8x8xf32>
    %cst_71 = arith.constant dense<0.000000e+00> : vector<8x32xf32>
    %188 = tpu.matmul %187, %176, %cst_71 {dimension_numbers = #tpu.dot_dimension_numbers<[1], [0], [0], [1], [0, 0, 1, 1], [], []>} : vector<8x8xf32>, vector<8x32xf32>, vector<8x32xf32> -> vector<8x32xf32>
    %189 = vector.extract_strided_slice %138 {offsets = [32, 0], sizes = [32, 64], strides = [1, 1]} : vector<64x64xf32> to vector<32x64xf32>
    %cst_72 = arith.constant dense<0.000000e+00> : vector<8x64xf32>
    %190 = tpu.matmul %188, %189, %cst_72 {dimension_numbers = #tpu.dot_dimension_numbers<[1], [0], [0], [1], [0, 0, 1, 1], [], []>} : vector<8x32xf32>, vector<32x64xf32>, vector<8x64xf32> -> vector<8x64xf32>
    %191 = arith.addf %165, %190 : vector<8x64xf32>
    %192 = arith.addf %119, %191 : vector<8x64xf32>
    %c1_73 = arith.constant 1 : index
    %c0_74 = arith.constant 0 : index
    %c0_75 = arith.constant 0 : index
    %193 = vector.load %arg8[%c1_73, %c0_74, %c0_75] : memref<2x1x64xf32, #tpu.memory_space<vmem>>, vector<1x1x64xf32>
    %194 = vector.shape_cast %193 : vector<1x1x64xf32> to vector<1x64xf32>
    %195 = arith.mulf %192, %192 : vector<8x64xf32>
    %cst_76 = arith.constant dense<0.000000e+00> : vector<8xf32>
    %196 = vector.multi_reduction <add>, %195, %cst_76 [1] : vector<8x64xf32> to vector<8xf32>
    %197 = vector.shape_cast %196 : vector<8xf32> to vector<8x1xf32>
    %cst_77 = arith.constant 6.400000e+01 : f32
    %198 = vector.broadcast %cst_77 : f32 to vector<8x1xf32>
    %199 = arith.divf %197, %198 : vector<8x1xf32>
    %cst_78 = arith.constant 9.99999997E-7 : f32
    %200 = vector.broadcast %cst_78 : f32 to vector<8x1xf32>
    %201 = arith.addf %199, %200 : vector<8x1xf32>
    %202 = math.rsqrt %201 : vector<8x1xf32>
    %203 = vector.broadcast %202 : vector<8x1xf32> to vector<8x64xf32>
    %204 = arith.mulf %192, %203 : vector<8x64xf32>
    %205 = vector.broadcast %194 : vector<1x64xf32> to vector<8x64xf32>
    %206 = arith.mulf %204, %205 : vector<8x64xf32>
    %c1_79 = arith.constant 1 : index
    %c0_80 = arith.constant 0 : index
    %c0_81 = arith.constant 0 : index
    %207 = vector.load %arg9[%c1_79, %c0_80, %c0_81] : memref<2x64x256xf32, #tpu.memory_space<vmem>>, vector<1x64x256xf32>
    %208 = vector.shape_cast %207 : vector<1x64x256xf32> to vector<64x256xf32>
    %cst_82 = arith.constant dense<0.000000e+00> : vector<8x256xf32>
    %209 = tpu.matmul %206, %208, %cst_82 {dimension_numbers = #tpu.dot_dimension_numbers<[1], [0], [0], [1], [0, 0, 1, 1], [], []>} : vector<8x64xf32>, vector<64x256xf32>, vector<8x256xf32> -> vector<8x256xf32>
    %210 = vector.extract_strided_slice %209 {offsets = [0, 0], sizes = [8, 128], strides = [1, 1]} : vector<8x256xf32> to vector<8x128xf32>
    %211 = vector.extract_strided_slice %209 {offsets = [0, 128], sizes = [8, 128], strides = [1, 1]} : vector<8x256xf32> to vector<8x128xf32>
    %212 = arith.negf %210 : vector<8x128xf32>
    %213 = math.exp %212 : vector<8x128xf32>
    %cst_83 = arith.constant 1.000000e+00 : f32
    %214 = vector.broadcast %cst_83 : f32 to vector<8x128xf32>
    %215 = arith.addf %214, %213 : vector<8x128xf32>
    %216 = arith.divf %214, %215 : vector<8x128xf32>
    %217 = arith.mulf %210, %216 : vector<8x128xf32>
    %218 = arith.mulf %217, %211 : vector<8x128xf32>
    %c1_84 = arith.constant 1 : index
    %c0_85 = arith.constant 0 : index
    %c0_86 = arith.constant 0 : index
    %219 = vector.load %arg10[%c1_84, %c0_85, %c0_86] : memref<2x128x64xf32, #tpu.memory_space<vmem>>, vector<1x128x64xf32>
    %220 = vector.shape_cast %219 : vector<1x128x64xf32> to vector<128x64xf32>
    %cst_87 = arith.constant dense<0.000000e+00> : vector<8x64xf32>
    %221 = tpu.matmul %218, %220, %cst_87 {dimension_numbers = #tpu.dot_dimension_numbers<[1], [0], [0], [1], [0, 0, 1, 1], [], []>} : vector<8x128xf32>, vector<128x64xf32>, vector<8x64xf32> -> vector<8x64xf32>
    %222 = arith.addf %192, %221 : vector<8x64xf32>
    %c0_88 = arith.constant 0 : index
    %c0_89 = arith.constant 0 : index
    %223 = vector.load %arg11[%c0_88, %c0_89] : memref<1x64xf32, #tpu.memory_space<vmem>>, vector<1x64xf32>
    %224 = arith.mulf %222, %222 : vector<8x64xf32>
    %cst_90 = arith.constant dense<0.000000e+00> : vector<8xf32>
    %225 = vector.multi_reduction <add>, %224, %cst_90 [1] : vector<8x64xf32> to vector<8xf32>
    %226 = vector.shape_cast %225 : vector<8xf32> to vector<8x1xf32>
    %cst_91 = arith.constant 6.400000e+01 : f32
    %227 = vector.broadcast %cst_91 : f32 to vector<8x1xf32>
    %228 = arith.divf %226, %227 : vector<8x1xf32>
    %cst_92 = arith.constant 9.99999997E-7 : f32
    %229 = vector.broadcast %cst_92 : f32 to vector<8x1xf32>
    %230 = arith.addf %228, %229 : vector<8x1xf32>
    %231 = math.rsqrt %230 : vector<8x1xf32>
    %232 = vector.broadcast %231 : vector<8x1xf32> to vector<8x64xf32>
    %233 = arith.mulf %222, %232 : vector<8x64xf32>
    %234 = vector.broadcast %223 : vector<1x64xf32> to vector<8x64xf32>
    %235 = arith.mulf %233, %234 : vector<8x64xf32>
    %c0_93 = arith.constant 0 : index
    %c0_94 = arith.constant 0 : index
    %c0_95 = arith.constant 0 : index
    %236 = vector.load %arg12[%c0_93, %c0_94, %c0_95] : memref<1x8x64xf32, #tpu.memory_space<vmem>>, vector<1x8x64xf32>
    %237 = vector.shape_cast %236 : vector<1x8x64xf32> to vector<8x64xf32>
    %238 = vector.shape_cast %235 : vector<8x64xf32> to vector<1x8x64xf32>
    tpu.vector_store %arg12[%c0_93, %c0_94, %c0_95], %238 {strides = array<i32>} : memref<1x8x64xf32, #tpu.memory_space<vmem>>, vector<1x8x64xf32>,
    return
  }
  func.func @transform_0(%arg0: i32) -> (i32, i32, i32) {
    %c0_i32 = arith.constant 0 : i32
    %c0_i32_0 = arith.constant 0 : i32
    %c0_i32_1 = arith.constant 0 : i32
    return %arg0, %c0_i32, %c0_i32_0 : i32, i32, i32
  }
  func.func @transform_1(%arg0: i32) -> (i32, i32, i32) {
    %c0_i32 = arith.constant 0 : i32
    %c0_i32_0 = arith.constant 0 : i32
    %c0_i32_1 = arith.constant 0 : i32
    return %arg0, %c0_i32, %c0_i32_0 : i32, i32, i32
  }
  func.func @transform_2(%arg0: i32) -> (i32, i32) {
    %c0_i32 = arith.constant 0 : i32
    %c0_i32_0 = arith.constant 0 : i32
    %c0_i32_1 = arith.constant 0 : i32
    return %c0_i32, %c0_i32_0 : i32, i32
  }
  func.func @transform_3(%arg0: i32) -> (i32, i32) {
    %c0_i32 = arith.constant 0 : i32
    %c0_i32_0 = arith.constant 0 : i32
    %c0_i32_1 = arith.constant 0 : i32
    return %c0_i32, %c0_i32_0 : i32, i32
  }
  func.func @transform_4(%arg0: i32) -> (i32, i32, i32) {
    %c0_i32 = arith.constant 0 : i32
    %c0_i32_0 = arith.constant 0 : i32
    %c0_i32_1 = arith.constant 0 : i32
    %c0_i32_2 = arith.constant 0 : i32
    return %c0_i32, %c0_i32_0, %c0_i32_1 : i32, i32, i32
  }
  func.func @transform_5(%arg0: i32) -> (i32, i32, i32) {
    %c0_i32 = arith.constant 0 : i32
    %c0_i32_0 = arith.constant 0 : i32
    %c0_i32_1 = arith.constant 0 : i32
    %c0_i32_2 = arith.constant 0 : i32
    return %c0_i32, %c0_i32_0, %c0_i32_1 : i32, i32, i32
  }
  func.func @transform_6(%arg0: i32) -> (i32, i32, i32) {
    %c0_i32 = arith.constant 0 : i32
    %c0_i32_0 = arith.constant 0 : i32
    %c0_i32_1 = arith.constant 0 : i32
    %c0_i32_2 = arith.constant 0 : i32
    return %c0_i32, %c0_i32_0, %c0_i32_1 : i32, i32, i32
  }
  func.func @transform_7(%arg0: i32) -> (i32, i32, i32) {
    %c0_i32 = arith.constant 0 : i32
    %c0_i32_0 = arith.constant 0 : i32
    %c0_i32_1 = arith.constant 0 : i32
    %c0_i32_2 = arith.constant 0 : i32
    return %c0_i32, %c0_i32_0, %c0_i32_1 : i32, i32, i32
  }
  func.func @transform_8(%arg0: i32) -> (i32, i32, i32) {
    %c0_i32 = arith.constant 0 : i32
    %c0_i32_0 = arith.constant 0 : i32
    %c0_i32_1 = arith.constant 0 : i32
    %c0_i32_2 = arith.constant 0 : i32
    return %c0_i32, %c0_i32_0, %c0_i32_1 : i32, i32, i32
  }
  func.func @transform_9(%arg0: i32) -> (i32, i32, i32) {
    %c0_i32 = arith.constant 0 : i32
    %c0_i32_0 = arith.constant 0 : i32
    %c0_i32_1 = arith.constant 0 : i32
    %c0_i32_2 = arith.constant 0 : i32
    return %c0_i32, %c0_i32_0, %c0_i32_1 : i32, i32, i32
  }
  func.func @transform_10(%arg0: i32) -> (i32, i32) {
    %c0_i32 = arith.constant 0 : i32
    %c0_i32_0 = arith.constant 0 : i32
    %c0_i32_1 = arith.constant 0 : i32
    return %c0_i32, %c0_i32_0 : i32, i32
  }
  func.func @transform_11(%arg0: i32) -> (i32, i32, i32) {
    %c0_i32 = arith.constant 0 : i32
    %c0_i32_0 = arith.constant 0 : i32
    %c0_i32_1 = arith.constant 0 : i32
    return %arg0, %c0_i32, %c0_i32_0 : i32, i32, i32
  }
}

</mosaic_0001>

<llo_original>
// kernel: model_wrapper_forward.1
$region0: #{model_wrapper_forward.1}
  #allocation0 [shape = 'u32[]', space=smem, size = 0x4, offset = 0x4, fixed_abs, tag = 'smem constant byte address 0x4 - core index']
  #allocation1 [shape = 'u32[144,128]{1,0:T(1,128)}', space=vmem, size = 0x12000, scoped, tag = 'internal scratch']
  %s0 = inlined_call_operand.vmem [shape: f32[2,8,64], index: 0, kind: input, shape index: {}]
  %s1 = inlined_call_operand.vmem [shape: f32[2,1,8], index: 1, kind: input, shape index: {}]
  %s2 = inlined_call_operand.vmem [shape: f32[8,32], index: 2, kind: input, shape index: {}]
  %s3 = inlined_call_operand.vmem [shape: f32[8,32], index: 3, kind: input, shape index: {}]
  %s4 = inlined_call_operand.vmem [shape: f32[2,1,64], index: 4, kind: input, shape index: {}]
  %s5 = inlined_call_operand.vmem [shape: f32[2,64,320], index: 5, kind: input, shape index: {}]
  %s6 = inlined_call_operand.hbm [shape: f32[2,64,64], index: 6, kind: input, shape index: {}]
  %s7 = inlined_call_operand.vmem [shape: f32[2,1,64], index: 7, kind: input, shape index: {}]
  %s8 = inlined_call_operand.vmem [shape: f32[2,64,256], index: 8, kind: input, shape index: {}]
  %s9 = inlined_call_operand.vmem [shape: f32[2,128,64], index: 9, kind: input, shape index: {}]
  %s10 = inlined_call_operand.vmem [shape: f32[1,64], index: 10, kind: input, shape index: {}]
  %s11 = inlined_call_operand.hbm [shape: f32[2,8,64], index: 11, kind: output, shape index: {}]
  %s12 = sld [smem:[#allocation0]]
  $region81: #{model_wrapper_forward.1} parent=0
    _
  %s14 = ssub.s32 1, %s12
  %s15 = scalar_select 0, %s14, %s12
  $region1: #{model_wrapper_forward.1} parent=0
    #allocation2 [shape = 'u8[65536]{0}', space=vmem, size = 0x10000, scoped, tag = 'input window, operand 6, single buffered']
    #allocation3 [shape = 's32[2]{0}', space=sflag, size = 0x8, scoped, tag = 'scoped memory for model_wrapper_forward.1']
    #allocation4 [shape = 's32[2]{0}', space=sflag, size = 0x8, scoped, tag = 'scoped memory for model_wrapper_forward.1']
    #allocation5 [shape = 'u8[8192]{0}', space=vmem, size = 0x2000, scoped, tag = 'output window, operand 0']
    %16 = vsyncpa [#allocation3], 0
    %17 = vsyncpa [#allocation4], 0
    %s18 = scalar_lea.sflag [#allocation4], 1
    %19 = vsyncpa %s18, 0
    loop: start=0, step=1, limit=4
    $region2: #{model_wrapper_forward.1} parent=1 // loop_pre_header
      _
    $region3: #{model_wrapper_forward.1} parent=1 // loop_header
      %s21 = sphi 0, %s25
      %p22 = scmp.ge.s32.totalorder %s21, 4
      %s31 = sphi 0, %s33
      %s34 = sphi 0, %s31
      %s35 = sphi 0, %s34
      %s51 = sphi 0, %s35
      %s57 = sphi 0, %s59
      %s60 = sphi 0, %s57
      %s61 = sphi 0, %s60
      %s77 = sphi 0, %s61
      %s81 = sphi 0, %s81
      %s83 = sphi 0, %s81
      %s84 = sphi 0, %s83
      %s98 = sphi 0, %s84
      %s102 = sphi 0, %s102
      %s104 = sphi 0, %s102
      %s105 = sphi 0, %s104
      %s119 = sphi 0, %s105
      %s123 = sphi 0, %s123
      %s125 = sphi 0, %s123
      %s126 = sphi 0, %s125
      %s140 = sphi 0, %s126
      %s144 = sphi 0, %s144
      %s146 = sphi 0, %s144
      %s147 = sphi 0, %s146
      %s161 = sphi 0, %s147
      %s165 = sphi 0, %s165
      %s167 = sphi 0, %s165
      %s168 = sphi 0, %s167
      %s182 = sphi 0, %s168
      %s186 = sphi 0, %s186
      %s188 = sphi 0, %s186
      %s189 = sphi 0, %s188
      %s203 = sphi 0, %s189
      %s207 = sphi 0, %s207
      %s209 = sphi 0, %s207
      %s210 = sphi 0, %s209
      %s224 = sphi 0, %s210
      %s228 = sphi 0, %s228
      %s230 = sphi 0, %s228
      %s231 = sphi 0, %s230
      %s245 = sphi 0, %s231
      %s249 = sphi 0, %s249
      %s251 = sphi 0, %s249
      %s252 = sphi 0, %s251
      %s266 = sphi 0, %s252
      %s272 = sphi 0, %s274
      %s275 = sphi 0, %s272
      %s276 = sphi 0, %s275
      %s292 = sphi 0, %s276
    $region4: #{model_wrapper_forward.1} parent=1 // loop_header_branch
      %24 = sbr.rel (%p22) target = $region8
    $region5: #{model_wrapper_forward.1} parent=1 // loop_body
      %s26 = ssub.s32 %s21, 1
      %s27 = ssub.s32 %s21, 2
      %s28 = sadd.s32 %s21, 1
      %s29 = ssub.s32 %s21, %s28
      %p30 = scmp.eq.s32.totalorder %s29, 0
      %s32 = sadd.s32 %s31, 1
      %s33 = scalar_select %p30, %s31, %s32
      %p36 = pneg %p30
      %p37 = scmp.eq.s32.totalorder %s21, 1
      %p38 = por %p36, %p37
      %p39 = scmp.ne.s32.totalorder %s31, %s34
      %p40 = scmp.eq.s32.totalorder %s21, 0
      %p41 = por %p39, %p40
      %p42 = scmp.ne.s32.totalorder %s31, %s34
      %p43 = scmp.eq.s32.totalorder %s26, 1
      %p44 = por %p42, %p43
      %p45 = scmp.ne.s32.totalorder %s34, %s35
      %p46 = scmp.eq.s32.totalorder %s26, 0
      %p47 = por %p45, %p46
      %p48 = scmp.ne.s32.totalorder %s34, %s35
      %p49 = scmp.eq.s32.totalorder %s27, 1
      %p50 = por %p48, %p49
      %p52 = scmp.ne.s32.totalorder %s35, %s51
      %p53 = scmp.eq.s32.totalorder %s27, 0
      %p54 = por %p52, %p53
      %s55 = ssub.s32 %s21, %s28
      %p56 = scmp.eq.s32.totalorder %s55, 0
      %s58 = sadd.s32 %s57, 1
      %s59 = scalar_select %p56, %s57, %s58
      %p62 = pneg %p56
      %p63 = scmp.eq.s32.totalorder %s21, 1
      %p64 = por %p62, %p63
      %p65 = scmp.ne.s32.totalorder %s57, %s60
      %p66 = scmp.eq.s32.totalorder %s21, 0
      %p67 = por %p65, %p66
      %p68 = scmp.ne.s32.totalorder %s57, %s60
      %p69 = scmp.eq.s32.totalorder %s26, 1
      %p70 = por %p68, %p69
      %p71 = scmp.ne.s32.totalorder %s60, %s61
      %p72 = scmp.eq.s32.totalorder %s26, 0
      %p73 = por %p71, %p72
      %p74 = scmp.ne.s32.totalorder %s60, %s61
      %p75 = scmp.eq.s32.totalorder %s27, 1
      %p76 = por %p74, %p75
      %p78 = scmp.ne.s32.totalorder %s61, %s77
      %p79 = scmp.eq.s32.totalorder %s27, 0
      %p80 = por %p78, %p79
      %s82 = sadd.s32 %s81, 1
      %p85 = scmp.eq.s32.totalorder %s21, 1
      %p86 = scmp.ne.s32.totalorder %s81, %s83
      %p87 = scmp.eq.s32.totalorder %s21, 0
      %p88 = por %p86, %p87
      %p89 = scmp.ne.s32.totalorder %s81, %s83
      %p90 = scmp.eq.s32.totalorder %s26, 1
      %p91 = por %p89, %p90
      %p92 = scmp.ne.s32.totalorder %s83, %s84
      %p93 = scmp.eq.s32.totalorder %s26, 0
      %p94 = por %p92, %p93
      %p95 = scmp.ne.s32.totalorder %s83, %s84
      %p96 = scmp.eq.s32.totalorder %s27, 1
      %p97 = por %p95, %p96
      %p99 = scmp.ne.s32.totalorder %s84, %s98
      %p100 = scmp.eq.s32.totalorder %s27, 0
      %p101 = por %p99, %p100
      %s103 = sadd.s32 %s102, 1
      %p106 = scmp.eq.s32.totalorder %s21, 1
      %p107 = scmp.ne.s32.totalorder %s102, %s104
      %p108 = scmp.eq.s32.totalorder %s21, 0
      %p109 = por %p107, %p108
      %p110 = scmp.ne.s32.totalorder %s102, %s104
      %p111 = scmp.eq.s32.totalorder %s26, 1
      %p112 = por %p110, %p111
      %p113 = scmp.ne.s32.totalorder %s104, %s105
      %p114 = scmp.eq.s32.totalorder %s26, 0
      %p115 = por %p113, %p114
      %p116 = scmp.ne.s32.totalorder %s104, %s105
      %p117 = scmp.eq.s32.totalorder %s27, 1
      %p118 = por %p116, %p117
      %p120 = scmp.ne.s32.totalorder %s105, %s119
      %p121 = scmp.eq.s32.totalorder %s27, 0
      %p122 = por %p120, %p121
      %s124 = sadd.s32 %s123, 1
      %p127 = scmp.eq.s32.totalorder %s21, 1
      %p128 = scmp.ne.s32.totalorder %s123, %s125
      %p129 = scmp.eq.s32.totalorder %s21, 0
      %p130 = por %p128, %p129
      %p131 = scmp.ne.s32.totalorder %s123, %s125
      %p132 = scmp.eq.s32.totalorder %s26, 1
      %p133 = por %p131, %p132
      %p134 = scmp.ne.s32.totalorder %s125, %s126
      %p135 = scmp.eq.s32.totalorder %s26, 0
      %p136 = por %p134, %p135
      %p137 = scmp.ne.s32.totalorder %s125, %s126
      %p138 = scmp.eq.s32.totalorder %s27, 1
      %p139 = por %p137, %p138
      %p141 = scmp.ne.s32.totalorder %s126, %s140
      %p142 = scmp.eq.s32.totalorder %s27, 0
      %p143 = por %p141, %p142
      %s145 = sadd.s32 %s144, 1
      %p148 = scmp.eq.s32.totalorder %s21, 1
      %p149 = scmp.ne.s32.totalorder %s144, %s146
      %p150 = scmp.eq.s32.totalorder %s21, 0
      %p151 = por %p149, %p150
      %p152 = scmp.ne.s32.totalorder %s144, %s146
      %p153 = scmp.eq.s32.totalorder %s26, 1
      %p154 = por %p152, %p153
      %p155 = scmp.ne.s32.totalorder %s146, %s147
      %p156 = scmp.eq.s32.totalorder %s26, 0
      %p157 = por %p155, %p156
      %p158 = scmp.ne.s32.totalorder %s146, %s147
      %p159 = scmp.eq.s32.totalorder %s27, 1
      %p160 = por %p158, %p159
      %p162 = scmp.ne.s32.totalorder %s147, %s161
      %p163 = scmp.eq.s32.totalorder %s27, 0
      %p164 = por %p162, %p163
      %s166 = sadd.s32 %s165, 1
      %p169 = scmp.eq.s32.totalorder %s21, 1
      %p170 = scmp.ne.s32.totalorder %s165, %s167
      %p171 = scmp.eq.s32.totalorder %s21, 0
      %p172 = por %p170, %p171
      %p173 = scmp.ne.s32.totalorder %s165, %s167
      %p174 = scmp.eq.s32.totalorder %s26, 1
      %p175 = por %p173, %p174
      %p176 = scmp.ne.s32.totalorder %s167, %s168
      %p177 = scmp.eq.s32.totalorder %s26, 0
      %p178 = por %p176, %p177
      %p179 = scmp.ne.s32.totalorder %s167, %s168
      %p180 = scmp.eq.s32.totalorder %s27, 1
      %p181 = por %p179, %p180
      %p183 = scmp.ne.s32.totalorder %s168, %s182
      %p184 = scmp.eq.s32.totalorder %s27, 0
      %p185 = por %p183, %p184
      %s187 = sadd.s32 %s186, 1
      %p190 = scmp.eq.s32.totalorder %s21, 1
      %p191 = scmp.ne.s32.totalorder %s186, %s188
      %p192 = scmp.eq.s32.totalorder %s21, 0
      %p193 = por %p191, %p192
      %p194 = scmp.ne.s32.totalorder %s186, %s188
      %p195 = scmp.eq.s32.totalorder %s26, 1
      %p196 = por %p194, %p195
      %p197 = scmp.ne.s32.totalorder %s188, %s189
      %p198 = scmp.eq.s32.totalorder %s26, 0
      %p199 = por %p197, %p198
      %p200 = scmp.ne.s32.totalorder %s188, %s189
      %p201 = scmp.eq.s32.totalorder %s27, 1
      %p202 = por %p200, %p201
      %p204 = scmp.ne.s32.totalorder %s189, %s203
      %p205 = scmp.eq.s32.totalorder %s27, 0
      %p206 = por %p204, %p205
      %s208 = sadd.s32 %s207, 1
      %p211 = scmp.eq.s32.totalorder %s21, 1
      %p212 = scmp.ne.s32.totalorder %s207, %s209
      %p213 = scmp.eq.s32.totalorder %s21, 0
      %p214 = por %p212, %p213
      %p215 = scmp.ne.s32.totalorder %s207, %s209
      %p216 = scmp.eq.s32.totalorder %s26, 1
      %p217 = por %p215, %p216
      %p218 = scmp.ne.s32.totalorder %s209, %s210
      %p219 = scmp.eq.s32.totalorder %s26, 0
      %p220 = por %p218, %p219
      %p221 = scmp.ne.s32.totalorder %s209, %s210
      %p222 = scmp.eq.s32.totalorder %s27, 1
      %p223 = por %p221, %p222
      %p225 = scmp.ne.s32.totalorder %s210, %s224
      %p226 = scmp.eq.s32.totalorder %s27, 0
      %p227 = por %p225, %p226
      %s229 = sadd.s32 %s228, 1
      %p232 = scmp.eq.s32.totalorder %s21, 1
      %p233 = scmp.ne.s32.totalorder %s228, %s230
      %p234 = scmp.eq.s32.totalorder %s21, 0
      %p235 = por %p233, %p234
      %p236 = scmp.ne.s32.totalorder %s228, %s230
      %p237 = scmp.eq.s32.totalorder %s26, 1
      %p238 = por %p236, %p237
      %p239 = scmp.ne.s32.totalorder %s230, %s231
      %p240 = scmp.eq.s32.totalorder %s26, 0
      %p241 = por %p239, %p240
      %p242 = scmp.ne.s32.totalorder %s230, %s231
      %p243 = scmp.eq.s32.totalorder %s27, 1
      %p244 = por %p242, %p243
      %p246 = scmp.ne.s32.totalorder %s231, %s245
      %p247 = scmp.eq.s32.totalorder %s27, 0
      %p248 = por %p246, %p247
      %s250 = sadd.s32 %s249, 1
      %p253 = scmp.eq.s32.totalorder %s21, 1
      %p254 = scmp.ne.s32.totalorder %s249, %s251
      %p255 = scmp.eq.s32.totalorder %s21, 0
      %p256 = por %p254, %p255
      %p257 = scmp.ne.s32.totalorder %s249, %s251
      %p258 = scmp.eq.s32.totalorder %s26, 1
      %p259 = por %p257, %p258
      %p260 = scmp.ne.s32.totalorder %s251, %s252
      %p261 = scmp.eq.s32.totalorder %s26, 0
      %p262 = por %p260, %p261
      %p263 = scmp.ne.s32.totalorder %s251, %s252
      %p264 = scmp.eq.s32.totalorder %s27, 1
      %p265 = por %p263, %p264
      %p267 = scmp.ne.s32.totalorder %s252, %s266
      %p268 = scmp.eq.s32.totalorder %s27, 0
      %p269 = por %p267, %p268
      %s270 = ssub.s32 %s21, %s28
      %p271 = scmp.eq.s32.totalorder %s270, 0
      %s273 = sadd.s32 %s272, 1
      %s274 = scalar_select %p271, %s272, %s273
      %p277 = pneg %p271
      %p278 = scmp.eq.s32.totalorder %s21, 1
      %p279 = por %p277, %p278
      %p280 = scmp.ne.s32.totalorder %s272, %s275
      %p281 = scmp.eq.s32.totalorder %s21, 0
      %p282 = por %p280, %p281
      %p283 = scmp.ne.s32.totalorder %s272, %s275
      %p284 = scmp.eq.s32.totalorder %s26, 1
      %p285 = por %p283, %p284
      %p286 = scmp.ne.s32.totalorder %s275, %s276
      %p287 = scmp.eq.s32.totalorder %s26, 0
      %p288 = por %p286, %p287
      %p289 = scmp.ne.s32.totalorder %s275, %s276
      %p290 = scmp.eq.s32.totalorder %s27, 1
      %p291 = por %p289, %p290
      %p293 = scmp.ne.s32.totalorder %s276, %s292
      %p294 = scmp.eq.s32.totalorder %s27, 0
      %p295 = por %p293, %p294
      %p296 = scmp.le.s32.totalorder 1, %s21
      %p297 = scmp.lt.s32.totalorder %s21, 3
      %p298 = pnand %p296, %p297
      %p299 = pneg %p298
      // Predicated region
      $region9: #{model_wrapper_forward.1} parent=5 // pred_check
        _
      $region10: #{model_wrapper_forward.1} parent=5 // pred_check_branch
        %301 = sbr.rel (%p298) target = $region12
      $region11: #{model_wrapper_forward.1} parent=5 // pred_region
        %s302 = ssub.s32 %s21, 1
        // Predicated region
        $region13: #{model_wrapper_forward.1} parent=11 // pred_check
          %p303 = pneg %p94
        $region14: #{model_wrapper_forward.1} parent=11 // pred_check_branch
          %305 = sbr.rel (%p303) target = $region16
        $region15: #{model_wrapper_forward.1} parent=11 // pred_region
          _
        $region16: #{model_wrapper_forward.1} parent=11 // pred_fallthru
          _
        // Predicated region
        $region17: #{model_wrapper_forward.1} parent=11 // pred_check
          %p306 = pneg %p115
        $region18: #{model_wrapper_forward.1} parent=11 // pred_check_branch
          %308 = sbr.rel (%p306) target = $region20
        $region19: #{model_wrapper_forward.1} parent=11 // pred_region
          _
        $region20: #{model_wrapper_forward.1} parent=11 // pred_fallthru
          _
        // Predicated region
        $region21: #{model_wrapper_forward.1} parent=11 // pred_check
          %p309 = pneg %p136
        $region22: #{model_wrapper_forward.1} parent=11 // pred_check_branch
          %311 = sbr.rel (%p309) target = $region24
        $region23: #{model_wrapper_forward.1} parent=11 // pred_region
          _
        $region24: #{model_wrapper_forward.1} parent=11 // pred_fallthru
          _
        // Predicated region
        $region25: #{model_wrapper_forward.1} parent=11 // pred_check
          %p312 = pneg %p157
        $region26: #{model_wrapper_forward.1} parent=11 // pred_check_branch
          %314 = sbr.rel (%p312) target = $region28
        $region27: #{model_wrapper_forward.1} parent=11 // pred_region
          _
        $region28: #{model_wrapper_forward.1} parent=11 // pred_fallthru
          _
        // Predicated region
        $region29: #{model_wrapper_forward.1} parent=11 // pred_check
          %p315 = pneg %p178
        $region30: #{model_wrapper_forward.1} parent=11 // pred_check_branch
          %317 = sbr.rel (%p315) target = $region32
        $region31: #{model_wrapper_forward.1} parent=11 // pred_region
          %s319 = ssub.s32 2048, 2048
          %320 = vsyncadd [#allocation3], %s319
          %s321 = sshll.u32 [#allocation2], 4
          %s322 = int_to_ptr.vmem [resolvable:$true] %s321
          %327 = dma.hbm_to_vmem [thread:$0]  %s6, 2048, %s322, [#allocation3], 128, 128, 8
        $region32: #{model_wrapper_forward.1} parent=11 // pred_fallthru
          _
        // Predicated region
        $region33: #{model_wrapper_forward.1} parent=11 // pred_check
          %p328 = pneg %p199
        $region34: #{model_wrapper_forward.1} parent=11 // pred_check_branch
          %330 = sbr.rel (%p328) target = $region36
        $region35: #{model_wrapper_forward.1} parent=11 // pred_region
          _
        $region36: #{model_wrapper_forward.1} parent=11 // pred_fallthru
          _
        // Predicated region
        $region37: #{model_wrapper_forward.1} parent=11 // pred_check
          %p331 = pneg %p220
        $region38: #{model_wrapper_forward.1} parent=11 // pred_check_branch
          %333 = sbr.rel (%p331) target = $region40
        $region39: #{model_wrapper_forward.1} parent=11 // pred_region
          _
        $region40: #{model_wrapper_forward.1} parent=11 // pred_fallthru
          _
        // Predicated region
        $region41: #{model_wrapper_forward.1} parent=11 // pred_check
          %p334 = pneg %p241
        $region42: #{model_wrapper_forward.1} parent=11 // pred_check_branch
          %336 = sbr.rel (%p334) target = $region44
        $region43: #{model_wrapper_forward.1} parent=11 // pred_region
          _
        $region44: #{model_wrapper_forward.1} parent=11 // pred_fallthru
          _
        // Predicated region
        $region45: #{model_wrapper_forward.1} parent=11 // pred_check
          %p337 = pneg %p262
        $region46: #{model_wrapper_forward.1} parent=11 // pred_check_branch
          %339 = sbr.rel (%p337) target = $region48
        $region47: #{model_wrapper_forward.1} parent=11 // pred_region
          _
        $region48: #{model_wrapper_forward.1} parent=11 // pred_fallthru
          _
      $region12: #{model_wrapper_forward.1} parent=5 // pred_fallthru
        _
      %p340 = scmp.lt.s32.totalorder %s21, 2
      // Predicated region
      $region49: #{model_wrapper_forward.1} parent=5 // pred_check
        %p341 = pneg %p340
      $region50: #{model_wrapper_forward.1} parent=5 // pred_check_branch
        %343 = sbr.rel (%p341) target = $region52
      $region51: #{model_wrapper_forward.1} parent=5 // pred_region
        // Predicated region
        $region53: #{model_wrapper_forward.1} parent=51 // pred_check
          %p344 = pneg %p41
        $region54: #{model_wrapper_forward.1} parent=51 // pred_check_branch
          %346 = sbr.rel (%p344) target = $region56
        $region55: #{model_wrapper_forward.1} parent=51 // pred_region
          %p347 = scmp.lt.s32.totalorder %s21, 1
          %s348 = scalar_select %p347, %s21, 1
          %s349 = smul.addr %s348, 8
          %s350 = scalar_lea.vmem %s0, %s349
        $region56: #{model_wrapper_forward.1} parent=51 // pred_fallthru
          _
        // Predicated region
        $region57: #{model_wrapper_forward.1} parent=51 // pred_check
          %p351 = pneg %p67
        $region58: #{model_wrapper_forward.1} parent=51 // pred_check_branch
          %353 = sbr.rel (%p351) target = $region60
        $region59: #{model_wrapper_forward.1} parent=51 // pred_region
          %p354 = scmp.lt.s32.totalorder %s21, 1
          %s355 = scalar_select %p354, %s21, 1
          %s356 = scalar_lea.vmem %s1, %s355
        $region60: #{model_wrapper_forward.1} parent=51 // pred_fallthru
          _
      $region52: #{model_wrapper_forward.1} parent=5 // pred_fallthru
        _
      %p357 = scmp.le.s32.totalorder 1, %s21
      %p358 = scmp.lt.s32.totalorder %s21, 3
      %p359 = pnand %p357, %p358
      %p360 = pneg %p359
      // Predicated region
      $region61: #{model_wrapper_forward.1} parent=5 // pred_check
        _
      $region62: #{model_wrapper_forward.1} parent=5 // pred_check_branch
        %362 = sbr.rel (%p359) target = $region64
      $region63: #{model_wrapper_forward.1} parent=5 // pred_region
        %s363 = ssub.s32 %s21, 1
        // Predicated region
        $region65: #{model_wrapper_forward.1} parent=63 // pred_check
          %p364 = pneg %p178
        $region66: #{model_wrapper_forward.1} parent=63 // pred_check_branch
          %366 = sbr.rel (%p364) target = $region68
        $region67: #{model_wrapper_forward.1} parent=63 // pred_region
          %367 = dma.done [#allocation3], 2048
        $region68: #{model_wrapper_forward.1} parent=63 // pred_fallthru
          _
        %p368 = scmp.lt.s32.totalorder %s26, 1
        %s369 = scalar_select %p368, %s26, 1
        %s370 = smul.addr %s369, 8
        %s371 = scalar_lea.vmem %s0, %s370
        %p372 = pneg %p47
        %p373 = pneg %p44
        %p374 = scmp.lt.s32.totalorder %s26, 1
        %s375 = scalar_select %p374, %s26, 1
        %s376 = scalar_lea.vmem %s1, %s375
        %p377 = pneg %p73
        %p378 = pneg %p70
        %p379 = pneg %p94
        %p380 = pneg %p91
        %p381 = pneg %p115
        %p382 = pneg %p112
        %p383 = pneg %p136
        %p384 = pneg %p133
        %p385 = pneg %p157
        %p386 = pneg %p154
        %p387 = pneg %p178
        %p388 = pneg %p175
        %p389 = pneg %p199
        %p390 = pneg %p196
        %p391 = pneg %p220
        %p392 = pneg %p217
        %p393 = pneg %p241
        %p394 = pneg %p238
        %p395 = pneg %p262
        %p396 = pneg %p259
        %p397 = pneg %p288
        %p398 = pneg %p285
        %s399 = sand.u32 %s275, 1
        %s400 = scalar_lea.sflag [#allocation4], %s399
        %s401 = sand.u32 %s275, 1
        %s402 = smul.addr %s401, 8
        %s403 = scalar_lea.vmem [#allocation5], %s402
        %p404 = scmp.lt.s32.totalorder %s26, 1
        %s405 = scalar_select %p404, %s26, 1
        %s406 = smul.addr %s405, 8
        %s407 = scalar_lea.vmem %s0, %s406
        %p408 = scmp.lt.s32.totalorder %s26, 1
        %s409 = scalar_select %p408, %s26, 1
        %s410 = scalar_lea.vmem %s1, %s409
        %v411 = vlaneseq
        %v412 = vshrl.u32 %v411, 7
        %v413 = vlaneseq
        %v414 = vand.u32 %v413, 127
        %v415 = vld [vmem:[%s410] sm:$0x1]
        %v416 = vsub.f32 %v415, 1.0
        %v417 = vmul.f32 %v416, 1e+09
        %vm418 = vcmp.le.s32.totalorder %v414, %v412
        %v420 = vlaneseq
        %v421 = vshrl.u32 %v420, 7
        %v422 = vsub.s32 0, %v421
        %v423 = vrot.slane %v417, %v422
        %v425 = vsel %vm418, %v423, -1e+09
        %v426 = vld [vmem:[%s2] sm:$0xff]
        %v427 = vld [vmem:[%s3] sm:$0xff]
        %v428 = vld [vmem:[%s407] sm:$0xff]
        %v429 = vld [vmem:[%s4] sm:$0x1]
        %v430 = vmul.f32 %v428, %v428
        %vm431 = vcmask 523264
        %v432 = vsel %vm431, %v430, 0.0
        %433 = vadd.xlane.f32.xlu0 %v432
        %v434 = vpop.xlane.xlu0 %433
        %v435 = vrcp.pop 64.0
        %v436 = vmul.f32 %v434, %v435
        %v437 = vadd.f32 %v436, 1e-06
        %v438 = vrsqrt.pop %v437
        %v439 = vmul.f32 %v428, %v438
        %v441 = vlaneseq
        %v442 = vshrl.u32 %v441, 7
        %v443 = vsub.s32 0, %v442
        %v444 = vrot.slane %v429, %v443
        %v446 = vmul.f32 %v439, %v444
        %v447 = vld [vmem:[%s5] sm:$0xff]
        %v448 = vld [vmem:[%s5 + $0x8] sm:$0xff]
        %v449 = vld [vmem:[%s5 + $0x10] sm:$0xff]
        %v450 = vld [vmem:[%s5 + $0x18] sm:$0xff]
        %v451 = vld [vmem:[%s5 + $0x20] sm:$0xff]
        %v452 = vld [vmem:[%s5 + $0x28] sm:$0xff]
        %v453 = vld [vmem:[%s5 + $0x30] sm:$0xff]
        %v454 = vld [vmem:[%s5 + $0x38] sm:$0xff]
        %v455 = vld [vmem:[%s5 + $0x40] sm:$0xff]
        %v456 = vld [vmem:[%s5 + $0x48] sm:$0xff]
        %v457 = vld [vmem:[%s5 + $0x50] sm:$0xff]
        %v458 = vld [vmem:[%s5 + $0x58] sm:$0xff]
        %v459 = vld [vmem:[%s5 + $0x60] sm:$0xff]
        %v460 = vld [vmem:[%s5 + $0x68] sm:$0xff]
        %v461 = vld [vmem:[%s5 + $0x70] sm:$0xff]
        %v462 = vld [vmem:[%s5 + $0x78] sm:$0xff]
        %v463 = vld [vmem:[%s5 + $0x80] sm:$0xff]
        %v464 = vld [vmem:[%s5 + $0x88] sm:$0xff]
        %v465 = vld [vmem:[%s5 + $0x90] sm:$0xff]
        %v466 = vld [vmem:[%s5 + $0x98] sm:$0xff]
        %v467 = vld [vmem:[%s5 + $0xa0] sm:$0xff]
        %v468 = vld [vmem:[%s5 + $0xa8] sm:$0xff]
        %v469 = vld [vmem:[%s5 + $0xb0] sm:$0xff]
        %v470 = vld [vmem:[%s5 + $0xb8] sm:$0xff]
        %v472 = vsel %vm431, %v446, 0
        %474 = vmatprep.subr.mxu0 %v448
        %475 = vmatpush1.msra.mxu0 %v447
        %476 = vmatprep.subr.mxu0 %v451
        %477 = vmatpush1.msra.mxu0 %v450
        %478 = vmatprep.subr.mxu0 %v454
        %479 = vmatpush1.msra.mxu0 %v453
        %480 = vmatprep.subr.mxu0 %v457
        %481 = vmatpush1.msra.mxu0 %v456
        %482 = vmatprep.subr.mxu0 %v460
        %483 = vmatpush1.msra.mxu0 %v459
        %484 = vmatprep.subr.mxu0 %v463
        %485 = vmatpush1.msra.mxu0 %v462
        %486 = vmatprep.subr.mxu0 %v466
        %487 = vmatpush1.msra.mxu0 %v465
        %488 = vmatprep.subr.mxu0 %v469
        %489 = vmatpush1.msra.mxu0 %v468
        %490 = vmatprep.subr.mxu0 0.0
        %491 = vmatpush1.msra.mxu0 0.0
        %492 = vmatprep.subr.mxu0 0.0
        %493 = vmatpush1.msra.mxu0 0.0
        %494 = vmatprep.subr.mxu0 0.0
        %495 = vmatpush1.msra.mxu0 0.0
        %496 = vmatprep.subr.mxu0 0.0
        %497 = vmatpush1.msra.mxu0 0.0
        %498 = vmatprep.subr.mxu0 0.0
        %499 = vmatpush1.msra.mxu0 0.0
        %500 = vmatprep.subr.mxu0 0.0
        %501 = vmatpush1.msra.mxu0 0.0
        %502 = vmatprep.subr.mxu0 0.0
        %503 = vmatpush1.msra.mxu0 0.0
        %504 = vmatprep.subr.mxu0 0.0
        %505 = vmatpush1.msra.mxu0 0.0
        %506 = vmatprep.subr.mxu0 0.0
        %507 = vmatpush1.msra.mxu0 0.0
        %508 = vmatprep.subr.mxu0 0.0
        %509 = vmatpush1.msra.mxu0 0.0
        %510 = vmatprep.subr.mxu0 0.0
        %511 = vmatpush1.msra.mxu0 0.0
        %512 = vmatprep.subr.mxu0 0.0
        %513 = vmatpush1.msra.mxu0 0.0
        %514 = vmatprep.subr.mxu0 0.0
        %515 = vmatpush1.msra.mxu0 0.0
        %516 = vmatprep.subr.mxu0 0.0
        %517 = vmatpush1.msra.mxu0 0.0
        %518 = vmatprep.subr.mxu0 0.0
        %519 = vmatpush1.msra.mxu0 0.0
        %520 = vmatprep.subr.mxu0 0.0
        %521 = vmatpush1.msra.mxu0 0.0
        %522 = vmatprep.subr.mxu0 0.0
        %523 = vmatpush1.msra.mxu0 0.0
        %524 = vmatprep.subr.mxu0 0.0
        %525 = vmatpush1.msra.mxu0 0.0
        %526 = vmatprep.subr.mxu0 0.0
        %527 = vmatpush1.msra.mxu0 0.0
        %528 = vmatprep.subr.mxu0 0.0
        %529 = vmatpush1.msra.mxu0 0.0
        %530 = vmatprep.subr.mxu0 0.0
        %531 = vmatpush1.msra.mxu0 0.0
        %532 = vmatprep.subr.mxu0 0.0
        %533 = vmatpush1.msra.mxu0 0.0
        %534 = vmatprep.subr.mxu0 0.0
        %535 = vmatpush1.msra.mxu0 0.0
        %536 = vmatprep.subr.mxu0 0.0
        %537 = vmatpush1.msra.mxu0 0.0
        %538 = vmatprep.mubr.f32.mxu0 0.0
        %539 = vmatmul.mubr.f32.gmra.mrb[0].mxu0 %v472
        %v540 = vpop.f32.mrb[0].mxu0
        %v541 = vadd.f32 0.0, %v540
        %v542 = vpop.f32.mrb[0].mxu0
        %v543 = vadd.f32 0.0, %v542
        %544 = vdwg.mxu0
        %545 = vmatprep.subr.mxu0 0.0
        %546 = vmatpush1.msra.mxu0 %v449
        %547 = vmatprep.subr.mxu0 0.0
        %548 = vmatpush1.msra.mxu0 %v452
        %549 = vmatprep.subr.mxu0 0.0
        %550 = vmatpush1.msra.mxu0 %v455
        %551 = vmatprep.subr.mxu0 0.0
        %552 = vmatpush1.msra.mxu0 %v458
        %553 = vmatprep.subr.mxu0 0.0
        %554 = vmatpush1.msra.mxu0 %v461
        %555 = vmatprep.subr.mxu0 0.0
        %556 = vmatpush1.msra.mxu0 %v464
        %557 = vmatprep.subr.mxu0 0.0
        %558 = vmatpush1.msra.mxu0 %v467
        %559 = vmatprep.subr.mxu0 0.0
        %560 = vmatpush1.msra.mxu0 %v470
        %561 = vmatprep.subr.mxu0 0.0
        %562 = vmatpush1.msra.mxu0 0.0
        %563 = vmatprep.subr.mxu0 0.0
        %564 = vmatpush1.msra.mxu0 0.0
        %565 = vmatprep.subr.mxu0 0.0
        %566 = vmatpush1.msra.mxu0 0.0
        %567 = vmatprep.subr.mxu0 0.0
        %568 = vmatpush1.msra.mxu0 0.0
        %569 = vmatprep.subr.mxu0 0.0
        %570 = vmatpush1.msra.mxu0 0.0
        %571 = vmatprep.subr.mxu0 0.0
        %572 = vmatpush1.msra.mxu0 0.0
        %573 = vmatprep.subr.mxu0 0.0
        %574 = vmatpush1.msra.mxu0 0.0
        %575 = vmatprep.subr.mxu0 0.0
        %576 = vmatpush1.msra.mxu0 0.0
        %577 = vmatprep.subr.mxu0 0.0
        %578 = vmatpush1.msra.mxu0 0.0
        %579 = vmatprep.subr.mxu0 0.0
        %580 = vmatpush1.msra.mxu0 0.0
        %581 = vmatprep.subr.mxu0 0.0
        %582 = vmatpush1.msra.mxu0 0.0
        %583 = vmatprep.subr.mxu0 0.0
        %584 = vmatpush1.msra.mxu0 0.0
        %585 = vmatprep.subr.mxu0 0.0
        %586 = vmatpush1.msra.mxu0 0.0
        %587 = vmatprep.subr.mxu0 0.0
        %588 = vmatpush1.msra.mxu0 0.0
        %589 = vmatprep.subr.mxu0 0.0
        %590 = vmatpush1.msra.mxu0 0.0
        %591 = vmatprep.subr.mxu0 0.0
        %592 = vmatpush1.msra.mxu0 0.0
        %593 = vmatprep.subr.mxu0 0.0
        %594 = vmatpush1.msra.mxu0 0.0
        %595 = vmatprep.subr.mxu0 0.0
        %596 = vmatpush1.msra.mxu0 0.0
        %597 = vmatprep.subr.mxu0 0.0
        %598 = vmatpush1.msra.mxu0 0.0
        %599 = vmatprep.subr.mxu0 0.0
        %600 = vmatpush1.msra.mxu0 0.0
        %601 = vmatprep.subr.mxu0 0.0
        %602 = vmatpush1.msra.mxu0 0.0
        %603 = vmatprep.subr.mxu0 0.0
        %604 = vmatpush1.msra.mxu0 0.0
        %605 = vmatprep.subr.mxu0 0.0
        %606 = vmatpush1.msra.mxu0 0.0
        %607 = vmatprep.subr.mxu0 0.0
        %608 = vmatpush1.msra.mxu0 0.0
        %609 = vmatprep.mubr.f32.mxu0 0.0
        %610 = vmatmul.mubr.f32.gmra.mrb[0].mxu0 %v472
        %v611 = vpop.f32.mrb[0].mxu0
        %v612 = vadd.f32 0.0, %v611
        %v613 = vpop.f32.mrb[0].mxu0
        %614 = vdwg.mxu0
        %v615 = vld [vmem:[#allocation2] sm:$0xff]
        %v616 = vld [vmem:[#allocation2 + $0x8] sm:$0xff]
        %v617 = vld [vmem:[#allocation2 + $0x10] sm:$0xff]
        %v618 = vld [vmem:[#allocation2 + $0x18] sm:$0xff]
        %v619 = vld [vmem:[#allocation2 + $0x20] sm:$0xff]
        %v620 = vld [vmem:[#allocation2 + $0x28] sm:$0xff]
        %v621 = vld [vmem:[#allocation2 + $0x30] sm:$0xff]
        %v622 = vld [vmem:[#allocation2 + $0x38] sm:$0xff]
        %v623 = vmul.f32 %v541, %v426
        %625 = vrot.lane.b32.xlu0 %v427, 64
        %v626 = vpop.permute.xlu0 %625
        %v628 = vmul.f32 %v541, %v626
        %630 = vrot.lane.b32.xlu0 %v628, 64
        %v631 = vpop.permute.xlu0 %630
        %v633 = vadd.f32 %v623, %v631
        %v634 = vmul.f32 %v543, %v426
        %v635 = vmul.f32 %v543, %v626
        %637 = vrot.lane.b32.xlu0 %v635, 64
        %v638 = vpop.permute.xlu0 %637
        %v640 = vadd.f32 %v634, %v638
        %vm641 = vcmask 261120
        %v643 = vsel %vm641, %v633, 0
        %v646 = vsel %vm641, %v640, 0
        %648 = vmatprep.subr.mxu0 0.0
        %649 = vmatpush1.xpose.msra.mxu0 %v646
        %650 = vmatprep.subr.mxu0 0.0
        %651 = vmatpush1.xpose.msra.mxu0 0.0
        %652 = vmatprep.subr.mxu0 0.0
        %653 = vmatpush1.xpose.msra.mxu0 0.0
        %654 = vmatprep.subr.mxu0 0.0
        %655 = vmatpush1.xpose.msra.mxu0 0.0
        %656 = vmatprep.subr.mxu0 0.0
        %657 = vmatpush1.xpose.msra.mxu0 0.0
        %658 = vmatprep.subr.mxu0 0.0
        %659 = vmatpush1.xpose.msra.mxu0 0.0
        %660 = vmatprep.subr.mxu0 0.0
        %661 = vmatpush1.xpose.msra.mxu0 0.0
        %662 = vmatprep.subr.mxu0 0.0
        %663 = vmatpush1.xpose.msra.mxu0 0.0
        %664 = vmatprep.subr.mxu0 0.0
        %665 = vmatpush1.xpose.msra.mxu0 0.0
        %666 = vmatprep.subr.mxu0 0.0
        %667 = vmatpush1.xpose.msra.mxu0 0.0
        %668 = vmatprep.subr.mxu0 0.0
        %669 = vmatpush1.xpose.msra.mxu0 0.0
        %670 = vmatprep.subr.mxu0 0.0
        %671 = vmatpush1.xpose.msra.mxu0 0.0
        %672 = vmatprep.subr.mxu0 0.0
        %673 = vmatpush1.xpose.msra.mxu0 0.0
        %674 = vmatprep.subr.mxu0 0.0
        %675 = vmatpush1.xpose.msra.mxu0 0.0
        %676 = vmatprep.subr.mxu0 0.0
        %677 = vmatpush1.xpose.msra.mxu0 0.0
        %678 = vmatprep.subr.mxu0 0.0
        %679 = vmatpush1.xpose.msra.mxu0 0.0
        %680 = vmatprep.subr.mxu0 0.0
        %681 = vmatpush1.xpose.msra.mxu0 0.0
        %682 = vmatprep.subr.mxu0 0.0
        %683 = vmatpush1.xpose.msra.mxu0 0.0
        %684 = vmatprep.subr.mxu0 0.0
        %685 = vmatpush1.xpose.msra.mxu0 0.0
        %686 = vmatprep.subr.mxu0 0.0
        %687 = vmatpush1.xpose.msra.mxu0 0.0
        %688 = vmatprep.subr.mxu0 0.0
        %689 = vmatpush1.xpose.msra.mxu0 0.0
        %690 = vmatprep.subr.mxu0 0.0
        %691 = vmatpush1.xpose.msra.mxu0 0.0
        %692 = vmatprep.subr.mxu0 0.0
        %693 = vmatpush1.xpose.msra.mxu0 0.0
        %694 = vmatprep.subr.mxu0 0.0
        %695 = vmatpush1.xpose.msra.mxu0 0.0
        %696 = vmatprep.subr.mxu0 0.0
        %697 = vmatpush1.xpose.msra.mxu0 0.0
        %698 = vmatprep.subr.mxu0 0.0
        %699 = vmatpush1.xpose.msra.mxu0 0.0
        %700 = vmatprep.subr.mxu0 0.0
        %701 = vmatpush1.xpose.msra.mxu0 0.0
        %702 = vmatprep.subr.mxu0 0.0
        %703 = vmatpush1.xpose.msra.mxu0 0.0
        %704 = vmatprep.subr.mxu0 0.0
        %705 = vmatpush1.xpose.msra.mxu0 0.0
        %706 = vmatprep.subr.mxu0 0.0
        %707 = vmatpush1.xpose.msra.mxu0 0.0
        %708 = vmatprep.subr.mxu0 0.0
        %709 = vmatpush1.xpose.msra.mxu0 0.0
        %710 = vmatprep.subr.mxu0 0.0
        %711 = vmatpush1.xpose.msra.mxu0 0.0
        %712 = vmatprep.mubr.f32.mxu0 0.0
        %713 = vmatmul.mubr.f32.gmra.mrb[0].mxu0 %v643
        %v714 = vpop.f32.mrb[0].mxu0
        %v715 = vadd.f32 %v425, %v714
        %v716 = vpop.f32.mrb[0].mxu0
        %717 = vdwg.mxu0
        %vm718 = vcmask 64512
        %v719 = vsel %vm718, %v715, -inf
        %720 = vmax.xlane.f32.xlu0 %v719
        %v721 = vpop.xlane.xlu0 %720
        %v722 = vsub.f32 %v715, %v721
        %v723 = vmul.f32 %v722, 1.442695
        %v724 = vpow.pop %v723
        %v725 = vsel %vm718, %v724, 0.0
        %726 = vadd.xlane.f32.xlu0 %v725
        %v727 = vpop.xlane.xlu0 %726
        %v728 = vrcp.pop %v727
        %v729 = vmul.f32 %v724, %v728
        %v731 = vsel %vm718, %v729, 0
        %733 = vmatprep.subr.mxu0 0.0
        %734 = vmatpush1.msra.mxu0 %v612
        %735 = vmatprep.subr.mxu0 0.0
        %736 = vmatpush1.msra.mxu0 0.0
        %737 = vmatprep.subr.mxu0 0.0
        %738 = vmatpush1.msra.mxu0 0.0
        %739 = vmatprep.subr.mxu0 0.0
        %740 = vmatpush1.msra.mxu0 0.0
        %741 = vmatprep.subr.mxu0 0.0
        %742 = vmatpush1.msra.mxu0 0.0
        %743 = vmatprep.subr.mxu0 0.0
        %744 = vmatpush1.msra.mxu0 0.0
        %745 = vmatprep.subr.mxu0 0.0
        %746 = vmatpush1.msra.mxu0 0.0
        %747 = vmatprep.subr.mxu0 0.0
        %748 = vmatpush1.msra.mxu0 0.0
        %749 = vmatprep.subr.mxu0 0.0
        %750 = vmatpush1.msra.mxu0 0.0
        %751 = vmatprep.subr.mxu0 0.0
        %752 = vmatpush1.msra.mxu0 0.0
        %753 = vmatprep.subr.mxu0 0.0
        %754 = vmatpush1.msra.mxu0 0.0
        %755 = vmatprep.subr.mxu0 0.0
        %756 = vmatpush1.msra.mxu0 0.0
        %757 = vmatprep.subr.mxu0 0.0
        %758 = vmatpush1.msra.mxu0 0.0
        %759 = vmatprep.subr.mxu0 0.0
        %760 = vmatpush1.msra.mxu0 0.0
        %761 = vmatprep.subr.mxu0 0.0
        %762 = vmatpush1.msra.mxu0 0.0
        %763 = vmatprep.subr.mxu0 0.0
        %764 = vmatpush1.msra.mxu0 0.0
        %765 = vmatprep.subr.mxu0 0.0
        %766 = vmatpush1.msra.mxu0 0.0
        %767 = vmatprep.subr.mxu0 0.0
        %768 = vmatpush1.msra.mxu0 0.0
        %769 = vmatprep.subr.mxu0 0.0
        %770 = vmatpush1.msra.mxu0 0.0
        %771 = vmatprep.subr.mxu0 0.0
        %772 = vmatpush1.msra.mxu0 0.0
        %773 = vmatprep.subr.mxu0 0.0
        %774 = vmatpush1.msra.mxu0 0.0
        %775 = vmatprep.subr.mxu0 0.0
        %776 = vmatpush1.msra.mxu0 0.0
        %777 = vmatprep.subr.mxu0 0.0
        %778 = vmatpush1.msra.mxu0 0.0
        %779 = vmatprep.subr.mxu0 0.0
        %780 = vmatpush1.msra.mxu0 0.0
        %781 = vmatprep.subr.mxu0 0.0
        %782 = vmatpush1.msra.mxu0 0.0
        %783 = vmatprep.subr.mxu0 0.0
        %784 = vmatpush1.msra.mxu0 0.0
        %785 = vmatprep.subr.mxu0 0.0
        %786 = vmatpush1.msra.mxu0 0.0
        %787 = vmatprep.subr.mxu0 0.0
        %788 = vmatpush1.msra.mxu0 0.0
        %789 = vmatprep.subr.mxu0 0.0
        %790 = vmatpush1.msra.mxu0 0.0
        %791 = vmatprep.subr.mxu0 0.0
        %792 = vmatpush1.msra.mxu0 0.0
        %793 = vmatprep.subr.mxu0 0.0
        %794 = vmatpush1.msra.mxu0 0.0
        %795 = vmatprep.subr.mxu0 0.0
        %796 = vmatpush1.msra.mxu0 0.0
        %797 = vmatprep.mubr.f32.mxu0 0.0
        %798 = vmatmul.mubr.f32.gmra.mrb[0].mxu0 %v731
        %v799 = vpop.f32.mrb[0].mxu0
        %v800 = vadd.f32 0.0, %v799
        %v801 = vpop.f32.mrb[0].mxu0
        %802 = vdwg.mxu0
        %804 = vrot.lane.b32.xlu0 %v426, 32
        %v805 = vpop.permute.xlu0 %804
        %v807 = vmul.f32 %v541, %v805
        %808 = vrot.lane.b32.xlu0 %v427, 96
        %v809 = vpop.permute.xlu0 %808
        %v811 = vmul.f32 %v541, %v809
        %813 = vrot.lane.b32.xlu0 %v811, 64
        %v814 = vpop.permute.xlu0 %813
        %v816 = vadd.f32 %v807, %v814
        %v817 = vmul.f32 %v543, %v805
        %v818 = vmul.f32 %v543, %v809
        %820 = vrot.lane.b32.xlu0 %v818, 64
        %v821 = vpop.permute.xlu0 %820
        %v823 = vadd.f32 %v817, %v821
        %825 = vrot.lane.b32.xlu0 %v816, 96
        %v826 = vpop.permute.xlu0 %825
        %828 = vrot.lane.b32.xlu0 %v823, 96
        %v829 = vpop.permute.xlu0 %828
        %v830 = vsel %vm641, %v826, 0
        %v832 = vsel %vm641, %v829, 0
        %834 = vmatprep.subr.mxu0 0.0
        %835 = vmatpush1.xpose.msra.mxu0 %v832
        %836 = vmatprep.subr.mxu0 0.0
        %837 = vmatpush1.xpose.msra.mxu0 0.0
        %838 = vmatprep.subr.mxu0 0.0
        %839 = vmatpush1.xpose.msra.mxu0 0.0
        %840 = vmatprep.subr.mxu0 0.0
        %841 = vmatpush1.xpose.msra.mxu0 0.0
        %842 = vmatprep.subr.mxu0 0.0
        %843 = vmatpush1.xpose.msra.mxu0 0.0
        %844 = vmatprep.subr.mxu0 0.0
        %845 = vmatpush1.xpose.msra.mxu0 0.0
        %846 = vmatprep.subr.mxu0 0.0
        %847 = vmatpush1.xpose.msra.mxu0 0.0
        %848 = vmatprep.subr.mxu0 0.0
        %849 = vmatpush1.xpose.msra.mxu0 0.0
        %850 = vmatprep.subr.mxu0 0.0
        %851 = vmatpush1.xpose.msra.mxu0 0.0
        %852 = vmatprep.subr.mxu0 0.0
        %853 = vmatpush1.xpose.msra.mxu0 0.0
        %854 = vmatprep.subr.mxu0 0.0
        %855 = vmatpush1.xpose.msra.mxu0 0.0
        %856 = vmatprep.subr.mxu0 0.0
        %857 = vmatpush1.xpose.msra.mxu0 0.0
        %858 = vmatprep.subr.mxu0 0.0
        %859 = vmatpush1.xpose.msra.mxu0 0.0
        %860 = vmatprep.subr.mxu0 0.0
        %861 = vmatpush1.xpose.msra.mxu0 0.0
        %862 = vmatprep.subr.mxu0 0.0
        %863 = vmatpush1.xpose.msra.mxu0 0.0
        %864 = vmatprep.subr.mxu0 0.0
        %865 = vmatpush1.xpose.msra.mxu0 0.0
        %866 = vmatprep.subr.mxu0 0.0
        %867 = vmatpush1.xpose.msra.mxu0 0.0
        %868 = vmatprep.subr.mxu0 0.0
        %869 = vmatpush1.xpose.msra.mxu0 0.0
        %870 = vmatprep.subr.mxu0 0.0
        %871 = vmatpush1.xpose.msra.mxu0 0.0
        %872 = vmatprep.subr.mxu0 0.0
        %873 = vmatpush1.xpose.msra.mxu0 0.0
        %874 = vmatprep.subr.mxu0 0.0
        %875 = vmatpush1.xpose.msra.mxu0 0.0
        %876 = vmatprep.subr.mxu0 0.0
        %877 = vmatpush1.xpose.msra.mxu0 0.0
        %878 = vmatprep.subr.mxu0 0.0
        %879 = vmatpush1.xpose.msra.mxu0 0.0
        %880 = vmatprep.subr.mxu0 0.0
        %881 = vmatpush1.xpose.msra.mxu0 0.0
        %882 = vmatprep.subr.mxu0 0.0
        %883 = vmatpush1.xpose.msra.mxu0 0.0
        %884 = vmatprep.subr.mxu0 0.0
        %885 = vmatpush1.xpose.msra.mxu0 0.0
        %886 = vmatprep.subr.mxu0 0.0
        %887 = vmatpush1.xpose.msra.mxu0 0.0
        %888 = vmatprep.subr.mxu0 0.0
        %889 = vmatpush1.xpose.msra.mxu0 0.0
        %890 = vmatprep.subr.mxu0 0.0
        %891 = vmatpush1.xpose.msra.mxu0 0.0
        %892 = vmatprep.subr.mxu0 0.0
        %893 = vmatpush1.xpose.msra.mxu0 0.0
        %894 = vmatprep.subr.mxu0 0.0
        %895 = vmatpush1.xpose.msra.mxu0 0.0
        %896 = vmatprep.subr.mxu0 0.0
        %897 = vmatpush1.xpose.msra.mxu0 0.0
        %898 = vmatprep.mubr.f32.mxu0 0.0
        %899 = vmatmul.mubr.f32.gmra.mrb[0].mxu0 %v830
        %v900 = vpop.f32.mrb[0].mxu0
        %v901 = vadd.f32 %v425, %v900
        %v902 = vpop.f32.mrb[0].mxu0
        %903 = vdwg.mxu0
        %v904 = vsel %vm718, %v901, -inf
        %905 = vmax.xlane.f32.xlu0 %v904
        %v906 = vpop.xlane.xlu0 %905
        %v907 = vsub.f32 %v901, %v906
        %v908 = vmul.f32 %v907, 1.442695
        %v909 = vpow.pop %v908
        %v910 = vsel %vm718, %v909, 0.0
        %911 = vadd.xlane.f32.xlu0 %v910
        %v912 = vpop.xlane.xlu0 %911
        %v913 = vrcp.pop %v912
        %v914 = vmul.f32 %v909, %v913
        %916 = vrot.lane.b32.xlu0 %v612, 96
        %v917 = vpop.permute.xlu0 %916
        %v920 = vsel %vm718, %v914, 0
        %922 = vmatprep.subr.mxu0 0.0
        %923 = vmatpush1.msra.mxu0 %v917
        %924 = vmatprep.subr.mxu0 0.0
        %925 = vmatpush1.msra.mxu0 0.0
        %926 = vmatprep.subr.mxu0 0.0
        %927 = vmatpush1.msra.mxu0 0.0
        %928 = vmatprep.subr.mxu0 0.0
        %929 = vmatpush1.msra.mxu0 0.0
        %930 = vmatprep.subr.mxu0 0.0
        %931 = vmatpush1.msra.mxu0 0.0
        %932 = vmatprep.subr.mxu0 0.0
        %933 = vmatpush1.msra.mxu0 0.0
        %934 = vmatprep.subr.mxu0 0.0
        %935 = vmatpush1.msra.mxu0 0.0
        %936 = vmatprep.subr.mxu0 0.0
        %937 = vmatpush1.msra.mxu0 0.0
        %938 = vmatprep.subr.mxu0 0.0
        %939 = vmatpush1.msra.mxu0 0.0
        %940 = vmatprep.subr.mxu0 0.0
        %941 = vmatpush1.msra.mxu0 0.0
        %942 = vmatprep.subr.mxu0 0.0
        %943 = vmatpush1.msra.mxu0 0.0
        %944 = vmatprep.subr.mxu0 0.0
        %945 = vmatpush1.msra.mxu0 0.0
        %946 = vmatprep.subr.mxu0 0.0
        %947 = vmatpush1.msra.mxu0 0.0
        %948 = vmatprep.subr.mxu0 0.0
        %949 = vmatpush1.msra.mxu0 0.0
        %950 = vmatprep.subr.mxu0 0.0
        %951 = vmatpush1.msra.mxu0 0.0
        %952 = vmatprep.subr.mxu0 0.0
        %953 = vmatpush1.msra.mxu0 0.0
        %954 = vmatprep.subr.mxu0 0.0
        %955 = vmatpush1.msra.mxu0 0.0
        %956 = vmatprep.subr.mxu0 0.0
        %957 = vmatpush1.msra.mxu0 0.0
        %958 = vmatprep.subr.mxu0 0.0
        %959 = vmatpush1.msra.mxu0 0.0
        %960 = vmatprep.subr.mxu0 0.0
        %961 = vmatpush1.msra.mxu0 0.0
        %962 = vmatprep.subr.mxu0 0.0
        %963 = vmatpush1.msra.mxu0 0.0
        %964 = vmatprep.subr.mxu0 0.0
        %965 = vmatpush1.msra.mxu0 0.0
        %966 = vmatprep.subr.mxu0 0.0
        %967 = vmatpush1.msra.mxu0 0.0
        %968 = vmatprep.subr.mxu0 0.0
        %969 = vmatpush1.msra.mxu0 0.0
        %970 = vmatprep.subr.mxu0 0.0
        %971 = vmatpush1.msra.mxu0 0.0
        %972 = vmatprep.subr.mxu0 0.0
        %973 = vmatpush1.msra.mxu0 0.0
        %974 = vmatprep.subr.mxu0 0.0
        %975 = vmatpush1.msra.mxu0 0.0
        %976 = vmatprep.subr.mxu0 0.0
        %977 = vmatpush1.msra.mxu0 0.0
        %978 = vmatprep.subr.mxu0 0.0
        %979 = vmatpush1.msra.mxu0 0.0
        %980 = vmatprep.subr.mxu0 0.0
        %981 = vmatpush1.msra.mxu0 0.0
        %982 = vmatprep.subr.mxu0 0.0
        %983 = vmatpush1.msra.mxu0 0.0
        %984 = vmatprep.subr.mxu0 0.0
        %985 = vmatpush1.msra.mxu0 0.0
        %986 = vmatprep.mubr.f32.mxu0 0.0
        %987 = vmatmul.mubr.f32.gmra.mrb[0].mxu0 %v920
        %v988 = vpop.f32.mrb[0].mxu0
        %v989 = vadd.f32 0.0, %v988
        %v990 = vpop.f32.mrb[0].mxu0
        %991 = vdwg.mxu0
        %v993 = vsel %vm641, %v989, 0
        %995 = vmatprep.subr.mxu0 0.0
        %996 = vmatpush1.msra.mxu0 %v619
        %997 = vmatprep.subr.mxu0 0.0
        %998 = vmatpush1.msra.mxu0 %v620
        %999 = vmatprep.subr.mxu0 0.0
        %1000 = vmatpush1.msra.mxu0 %v621
        %1001 = vmatprep.subr.mxu0 0.0
        %1002 = vmatpush1.msra.mxu0 %v622
        %1003 = vmatprep.subr.mxu0 0.0
        %1004 = vmatpush1.msra.mxu0 0.0
        %1005 = vmatprep.subr.mxu0 0.0
        %1006 = vmatpush1.msra.mxu0 0.0
        %1007 = vmatprep.subr.mxu0 0.0
        %1008 = vmatpush1.msra.mxu0 0.0
        %1009 = vmatprep.subr.mxu0 0.0
        %1010 = vmatpush1.msra.mxu0 0.0
        %1011 = vmatprep.subr.mxu0 0.0
        %1012 = vmatpush1.msra.mxu0 0.0
        %1013 = vmatprep.subr.mxu0 0.0
        %1014 = vmatpush1.msra.mxu0 0.0
        %1015 = vmatprep.subr.mxu0 0.0
        %1016 = vmatpush1.msra.mxu0 0.0
        %1017 = vmatprep.subr.mxu0 0.0
        %1018 = vmatpush1.msra.mxu0 0.0
        %1019 = vmatprep.subr.mxu0 0.0
        %1020 = vmatpush1.msra.mxu0 0.0
        %1021 = vmatprep.subr.mxu0 0.0
        %1022 = vmatpush1.msra.mxu0 0.0
        %1023 = vmatprep.subr.mxu0 0.0
        %1024 = vmatpush1.msra.mxu0 0.0
        %1025 = vmatprep.subr.mxu0 0.0
        %1026 = vmatpush1.msra.mxu0 0.0
        %1027 = vmatprep.subr.mxu0 0.0
        %1028 = vmatpush1.msra.mxu0 0.0
        %1029 = vmatprep.subr.mxu0 0.0
        %1030 = vmatpush1.msra.mxu0 0.0
        %1031 = vmatprep.subr.mxu0 0.0
        %1032 = vmatpush1.msra.mxu0 0.0
        %1033 = vmatprep.subr.mxu0 0.0
        %1034 = vmatpush1.msra.mxu0 0.0
        %1035 = vmatprep.subr.mxu0 0.0
        %1036 = vmatpush1.msra.mxu0 0.0
        %1037 = vmatprep.subr.mxu0 0.0
        %1038 = vmatpush1.msra.mxu0 0.0
        %1039 = vmatprep.subr.mxu0 0.0
        %1040 = vmatpush1.msra.mxu0 0.0
        %1041 = vmatprep.subr.mxu0 0.0
        %1042 = vmatpush1.msra.mxu0 0.0
        %1043 = vmatprep.subr.mxu0 0.0
        %1044 = vmatpush1.msra.mxu0 0.0
        %1045 = vmatprep.subr.mxu0 0.0
        %1046 = vmatpush1.msra.mxu0 0.0
        %1047 = vmatprep.subr.mxu0 0.0
        %1048 = vmatpush1.msra.mxu0 0.0
        %1049 = vmatprep.subr.mxu0 0.0
        %1050 = vmatpush1.msra.mxu0 0.0
        %1051 = vmatprep.subr.mxu0 0.0
        %1052 = vmatpush1.msra.mxu0 0.0
        %1053 = vmatprep.subr.mxu0 0.0
        %1054 = vmatpush1.msra.mxu0 0.0
        %1055 = vmatprep.subr.mxu0 0.0
        %1056 = vmatpush1.msra.mxu0 0.0
        %1057 = vmatprep.subr.mxu0 0.0
        %1058 = vmatpush1.msra.mxu0 0.0
        %1059 = vmatprep.mubr.f32.mxu0 0.0
        %1060 = vmatmul.mubr.f32.gmra.mrb[0].mxu0 %v993
        %v1061 = vpop.f32.mrb[0].mxu0
        %v1062 = vadd.f32 0.0, %v1061
        %v1063 = vpop.f32.mrb[0].mxu0
        %1064 = vdwg.mxu0
        %v1066 = vsel %vm641, %v800, 0
        %1068 = vmatprep.subr.mxu0 0.0
        %1069 = vmatpush1.msra.mxu0 %v615
        %1070 = vmatprep.subr.mxu0 0.0
        %1071 = vmatpush1.msra.mxu0 %v616
        %1072 = vmatprep.subr.mxu0 0.0
        %1073 = vmatpush1.msra.mxu0 %v617
        %1074 = vmatprep.subr.mxu0 0.0
        %1075 = vmatpush1.msra.mxu0 %v618
        %1076 = vmatprep.subr.mxu0 0.0
        %1077 = vmatpush1.msra.mxu0 0.0
        %1078 = vmatprep.subr.mxu0 0.0
        %1079 = vmatpush1.msra.mxu0 0.0
        %1080 = vmatprep.subr.mxu0 0.0
        %1081 = vmatpush1.msra.mxu0 0.0
        %1082 = vmatprep.subr.mxu0 0.0
        %1083 = vmatpush1.msra.mxu0 0.0
        %1084 = vmatprep.subr.mxu0 0.0
        %1085 = vmatpush1.msra.mxu0 0.0
        %1086 = vmatprep.subr.mxu0 0.0
        %1087 = vmatpush1.msra.mxu0 0.0
        %1088 = vmatprep.subr.mxu0 0.0
        %1089 = vmatpush1.msra.mxu0 0.0
        %1090 = vmatprep.subr.mxu0 0.0
        %1091 = vmatpush1.msra.mxu0 0.0
        %1092 = vmatprep.subr.mxu0 0.0
        %1093 = vmatpush1.msra.mxu0 0.0
        %1094 = vmatprep.subr.mxu0 0.0
        %1095 = vmatpush1.msra.mxu0 0.0
        %1096 = vmatprep.subr.mxu0 0.0
        %1097 = vmatpush1.msra.mxu0 0.0
        %1098 = vmatprep.subr.mxu0 0.0
        %1099 = vmatpush1.msra.mxu0 0.0
        %1100 = vmatprep.subr.mxu0 0.0
        %1101 = vmatpush1.msra.mxu0 0.0
        %1102 = vmatprep.subr.mxu0 0.0
        %1103 = vmatpush1.msra.mxu0 0.0
        %1104 = vmatprep.subr.mxu0 0.0
        %1105 = vmatpush1.msra.mxu0 0.0
        %1106 = vmatprep.subr.mxu0 0.0
        %1107 = vmatpush1.msra.mxu0 0.0
        %1108 = vmatprep.subr.mxu0 0.0
        %1109 = vmatpush1.msra.mxu0 0.0
        %1110 = vmatprep.subr.mxu0 0.0
        %1111 = vmatpush1.msra.mxu0 0.0
        %1112 = vmatprep.subr.mxu0 0.0
        %1113 = vmatpush1.msra.mxu0 0.0
        %1114 = vmatprep.subr.mxu0 0.0
        %1115 = vmatpush1.msra.mxu0 0.0
        %1116 = vmatprep.subr.mxu0 0.0
        %1117 = vmatpush1.msra.mxu0 0.0
        %1118 = vmatprep.subr.mxu0 0.0
        %1119 = vmatpush1.msra.mxu0 0.0
        %1120 = vmatprep.subr.mxu0 0.0
        %1121 = vmatpush1.msra.mxu0 0.0
        %1122 = vmatprep.subr.mxu0 0.0
        %1123 = vmatpush1.msra.mxu0 0.0
        %1124 = vmatprep.subr.mxu0 0.0
        %1125 = vmatpush1.msra.mxu0 0.0
        %1126 = vmatprep.subr.mxu0 0.0
        %1127 = vmatpush1.msra.mxu0 0.0
        %1128 = vmatprep.subr.mxu0 0.0
        %1129 = vmatpush1.msra.mxu0 0.0
        %1130 = vmatprep.subr.mxu0 0.0
        %1131 = vmatpush1.msra.mxu0 0.0
        %1132 = vmatprep.mubr.f32.mxu0 0.0
        %1133 = vmatmul.mubr.f32.gmra.mrb[0].mxu0 %v1066
        %v1134 = vpop.f32.mrb[0].mxu0
        %v1135 = vadd.f32 %v1062, %v1134
        %v1136 = vpop.f32.mrb[0].mxu0
        %1137 = vdwg.mxu0
        %v1138 = vadd.f32 %v428, %v1135
        %v1139 = vld [vmem:[%s7] sm:$0x1]
        %v1140 = vmul.f32 %v1138, %v1138
        %v1141 = vsel %vm431, %v1140, 0.0
        %1142 = vadd.xlane.f32.xlu0 %v1141
        %v1143 = vpop.xlane.xlu0 %1142
        %v1144 = vmul.f32 %v1143, %v435
        %v1145 = vadd.f32 %v1144, 1e-06
        %v1146 = vrsqrt.pop %v1145
        %v1147 = vmul.f32 %v1138, %v1146
        %v1149 = vlaneseq
        %v1150 = vshrl.u32 %v1149, 7
        %v1151 = vsub.s32 0, %v1150
        %v1152 = vrot.slane %v1139, %v1151
        %v1154 = vmul.f32 %v1147, %v1152
        %v1155 = vld [vmem:[%s8] sm:$0xff]
        %v1156 = vld [vmem:[%s8 + $0x8] sm:$0xff]
        %v1157 = vld [vmem:[%s8 + $0x10] sm:$0xff]
        %v1158 = vld [vmem:[%s8 + $0x18] sm:$0xff]
        %v1159 = vld [vmem:[%s8 + $0x20] sm:$0xff]
        %v1160 = vld [vmem:[%s8 + $0x28] sm:$0xff]
        %v1161 = vld [vmem:[%s8 + $0x30] sm:$0xff]
        %v1162 = vld [vmem:[%s8 + $0x38] sm:$0xff]
        %v1163 = vld [vmem:[%s8 + $0x40] sm:$0xff]
        %v1164 = vld [vmem:[%s8 + $0x48] sm:$0xff]
        %v1165 = vld [vmem:[%s8 + $0x50] sm:$0xff]
        %v1166 = vld [vmem:[%s8 + $0x58] sm:$0xff]
        %v1167 = vld [vmem:[%s8 + $0x60] sm:$0xff]
        %v1168 = vld [vmem:[%s8 + $0x68] sm:$0xff]
        %v1169 = vld [vmem:[%s8 + $0x70] sm:$0xff]
        %v1170 = vld [vmem:[%s8 + $0x78] sm:$0xff]
        %v1172 = vsel %vm431, %v1154, 0
        %1174 = vmatprep.subr.mxu0 %v1156
        %1175 = vmatpush1.msra.mxu0 %v1155
        %1176 = vmatprep.subr.mxu0 %v1158
        %1177 = vmatpush1.msra.mxu0 %v1157
        %1178 = vmatprep.subr.mxu0 %v1160
        %1179 = vmatpush1.msra.mxu0 %v1159
        %1180 = vmatprep.subr.mxu0 %v1162
        %1181 = vmatpush1.msra.mxu0 %v1161
        %1182 = vmatprep.subr.mxu0 %v1164
        %1183 = vmatpush1.msra.mxu0 %v1163
        %1184 = vmatprep.subr.mxu0 %v1166
        %1185 = vmatpush1.msra.mxu0 %v1165
        %1186 = vmatprep.subr.mxu0 %v1168
        %1187 = vmatpush1.msra.mxu0 %v1167
        %1188 = vmatprep.subr.mxu0 %v1170
        %1189 = vmatpush1.msra.mxu0 %v1169
        %1190 = vmatprep.subr.mxu0 0.0
        %1191 = vmatpush1.msra.mxu0 0.0
        %1192 = vmatprep.subr.mxu0 0.0
        %1193 = vmatpush1.msra.mxu0 0.0
        %1194 = vmatprep.subr.mxu0 0.0
        %1195 = vmatpush1.msra.mxu0 0.0
        %1196 = vmatprep.subr.mxu0 0.0
        %1197 = vmatpush1.msra.mxu0 0.0
        %1198 = vmatprep.subr.mxu0 0.0
        %1199 = vmatpush1.msra.mxu0 0.0
        %1200 = vmatprep.subr.mxu0 0.0
        %1201 = vmatpush1.msra.mxu0 0.0
        %1202 = vmatprep.subr.mxu0 0.0
        %1203 = vmatpush1.msra.mxu0 0.0
        %1204 = vmatprep.subr.mxu0 0.0
        %1205 = vmatpush1.msra.mxu0 0.0
        %1206 = vmatprep.subr.mxu0 0.0
        %1207 = vmatpush1.msra.mxu0 0.0
        %1208 = vmatprep.subr.mxu0 0.0
        %1209 = vmatpush1.msra.mxu0 0.0
        %1210 = vmatprep.subr.mxu0 0.0
        %1211 = vmatpush1.msra.mxu0 0.0
        %1212 = vmatprep.subr.mxu0 0.0
        %1213 = vmatpush1.msra.mxu0 0.0
        %1214 = vmatprep.subr.mxu0 0.0
        %1215 = vmatpush1.msra.mxu0 0.0
        %1216 = vmatprep.subr.mxu0 0.0
        %1217 = vmatpush1.msra.mxu0 0.0
        %1218 = vmatprep.subr.mxu0 0.0
        %1219 = vmatpush1.msra.mxu0 0.0
        %1220 = vmatprep.subr.mxu0 0.0
        %1221 = vmatpush1.msra.mxu0 0.0
        %1222 = vmatprep.subr.mxu0 0.0
        %1223 = vmatpush1.msra.mxu0 0.0
        %1224 = vmatprep.subr.mxu0 0.0
        %1225 = vmatpush1.msra.mxu0 0.0
        %1226 = vmatprep.subr.mxu0 0.0
        %1227 = vmatpush1.msra.mxu0 0.0
        %1228 = vmatprep.subr.mxu0 0.0
        %1229 = vmatpush1.msra.mxu0 0.0
        %1230 = vmatprep.subr.mxu0 0.0
        %1231 = vmatpush1.msra.mxu0 0.0
        %1232 = vmatprep.subr.mxu0 0.0
        %1233 = vmatpush1.msra.mxu0 0.0
        %1234 = vmatprep.subr.mxu0 0.0
        %1235 = vmatpush1.msra.mxu0 0.0
        %1236 = vmatprep.subr.mxu0 0.0
        %1237 = vmatpush1.msra.mxu0 0.0
        %1238 = vmatprep.mubr.f32.mxu0 0.0
        %1239 = vmatmul.mubr.f32.gmra.mrb[0].mxu0 %v1172
        %v1240 = vpop.f32.mrb[0].mxu0
        %v1241 = vadd.f32 0.0, %v1240
        %v1242 = vpop.f32.mrb[0].mxu0
        %v1243 = vadd.f32 0.0, %v1242
        %1244 = vdwg.mxu0
        %v1245 = vxor.u32 %v1241, 2147483648
        %v1246 = vmul.f32 %v1245, 1.442695
        %v1247 = vpow.pop %v1246
        %v1248 = vadd.f32 %v1247, 1.0
        %v1249 = vrcp.pop %v1248
        %v1250 = vmul.f32 1.0, %v1249
        %v1251 = vmul.f32 %v1241, %v1250
        %v1252 = vmul.f32 %v1251, %v1243
        %v1253 = vld [vmem:[%s9] sm:$0xff]
        %v1254 = vld [vmem:[%s9 + $0x8] sm:$0xff]
        %v1255 = vld [vmem:[%s9 + $0x10] sm:$0xff]
        %v1256 = vld [vmem:[%s9 + $0x18] sm:$0xff]
        %v1257 = vld [vmem:[%s9 + $0x20] sm:$0xff]
        %v1258 = vld [vmem:[%s9 + $0x28] sm:$0xff]
        %v1259 = vld [vmem:[%s9 + $0x30] sm:$0xff]
        %v1260 = vld [vmem:[%s9 + $0x38] sm:$0xff]
        %v1261 = vld [vmem:[%s9 + $0x40] sm:$0xff]
        %v1262 = vld [vmem:[%s9 + $0x48] sm:$0xff]
        %v1263 = vld [vmem:[%s9 + $0x50] sm:$0xff]
        %v1264 = vld [vmem:[%s9 + $0x58] sm:$0xff]
        %v1265 = vld [vmem:[%s9 + $0x60] sm:$0xff]
        %v1266 = vld [vmem:[%s9 + $0x68] sm:$0xff]
        %v1267 = vld [vmem:[%s9 + $0x70] sm:$0xff]
        %v1268 = vld [vmem:[%s9 + $0x78] sm:$0xff]
        %1269 = vmatprep.subr.mxu0 0.0
        %1270 = vmatpush1.msra.mxu0 %v1253
        %1271 = vmatprep.subr.mxu0 0.0
        %1272 = vmatpush1.msra.mxu0 %v1254
        %1273 = vmatprep.subr.mxu0 0.0
        %1274 = vmatpush1.msra.mxu0 %v1255
        %1275 = vmatprep.subr.mxu0 0.0
        %1276 = vmatpush1.msra.mxu0 %v1256
        %1277 = vmatprep.subr.mxu0 0.0
        %1278 = vmatpush1.msra.mxu0 %v1257
        %1279 = vmatprep.subr.mxu0 0.0
        %1280 = vmatpush1.msra.mxu0 %v1258
        %1281 = vmatprep.subr.mxu0 0.0
        %1282 = vmatpush1.msra.mxu0 %v1259
        %1283 = vmatprep.subr.mxu0 0.0
        %1284 = vmatpush1.msra.mxu0 %v1260
        %1285 = vmatprep.subr.mxu0 0.0
        %1286 = vmatpush1.msra.mxu0 %v1261
        %1287 = vmatprep.subr.mxu0 0.0
        %1288 = vmatpush1.msra.mxu0 %v1262
        %1289 = vmatprep.subr.mxu0 0.0
        %1290 = vmatpush1.msra.mxu0 %v1263
        %1291 = vmatprep.subr.mxu0 0.0
        %1292 = vmatpush1.msra.mxu0 %v1264
        %1293 = vmatprep.subr.mxu0 0.0
        %1294 = vmatpush1.msra.mxu0 %v1265
        %1295 = vmatprep.subr.mxu0 0.0
        %1296 = vmatpush1.msra.mxu0 %v1266
        %1297 = vmatprep.subr.mxu0 0.0
        %1298 = vmatpush1.msra.mxu0 %v1267
        %1299 = vmatprep.subr.mxu0 0.0
        %1300 = vmatpush1.msra.mxu0 %v1268
        %1301 = vmatprep.subr.mxu0 0.0
        %1302 = vmatpush1.msra.mxu0 0.0
        %1303 = vmatprep.subr.mxu0 0.0
        %1304 = vmatpush1.msra.mxu0 0.0
        %1305 = vmatprep.subr.mxu0 0.0
        %1306 = vmatpush1.msra.mxu0 0.0
        %1307 = vmatprep.subr.mxu0 0.0
        %1308 = vmatpush1.msra.mxu0 0.0
        %1309 = vmatprep.subr.mxu0 0.0
        %1310 = vmatpush1.msra.mxu0 0.0
        %1311 = vmatprep.subr.mxu0 0.0
        %1312 = vmatpush1.msra.mxu0 0.0
        %1313 = vmatprep.subr.mxu0 0.0
        %1314 = vmatpush1.msra.mxu0 0.0
        %1315 = vmatprep.subr.mxu0 0.0
        %1316 = vmatpush1.msra.mxu0 0.0
        %1317 = vmatprep.subr.mxu0 0.0
        %1318 = vmatpush1.msra.mxu0 0.0
        %1319 = vmatprep.subr.mxu0 0.0
        %1320 = vmatpush1.msra.mxu0 0.0
        %1321 = vmatprep.subr.mxu0 0.0
        %1322 = vmatpush1.msra.mxu0 0.0
        %1323 = vmatprep.subr.mxu0 0.0
        %1324 = vmatpush1.msra.mxu0 0.0
        %1325 = vmatprep.subr.mxu0 0.0
        %1326 = vmatpush1.msra.mxu0 0.0
        %1327 = vmatprep.subr.mxu0 0.0
        %1328 = vmatpush1.msra.mxu0 0.0
        %1329 = vmatprep.subr.mxu0 0.0
        %1330 = vmatpush1.msra.mxu0 0.0
        %1331 = vmatprep.subr.mxu0 0.0
        %1332 = vmatpush1.msra.mxu0 0.0
        %1333 = vmatprep.mubr.f32.mxu0 0.0
        %1334 = vmatmul.mubr.f32.gmra.mrb[0].mxu0 %v1252
        %v1335 = vpop.f32.mrb[0].mxu0
        %v1336 = vadd.f32 0.0, %v1335
        %v1337 = vpop.f32.mrb[0].mxu0
        %1338 = vdwg.mxu0
        %v1339 = vadd.f32 %v1138, %v1336
        %s1340 = scalar_lea.vmem %s4, 1
        %v1341 = vld [vmem:[%s1340] sm:$0x1]
        %v1342 = vmul.f32 %v1339, %v1339
        %v1343 = vsel %vm431, %v1342, 0.0
        %1344 = vadd.xlane.f32.xlu0 %v1343
        %v1345 = vpop.xlane.xlu0 %1344
        %v1346 = vmul.f32 %v1345, %v435
        %v1347 = vadd.f32 %v1346, 1e-06
        %v1348 = vrsqrt.pop %v1347
        %v1349 = vmul.f32 %v1339, %v1348
        %v1351 = vlaneseq
        %v1352 = vshrl.u32 %v1351, 7
        %v1353 = vsub.s32 0, %v1352
        %v1354 = vrot.slane %v1341, %v1353
        %v1356 = vmul.f32 %v1349, %v1354
        %s1357 = scalar_lea.vmem %s5, 192
        %v1358 = vld [vmem:[%s1357] sm:$0xff]
        %v1359 = vld [vmem:[%s1357 + $0x8] sm:$0xff]
        %v1360 = vld [vmem:[%s1357 + $0x10] sm:$0xff]
        %v1361 = vld [vmem:[%s1357 + $0x18] sm:$0xff]
        %v1362 = vld [vmem:[%s1357 + $0x20] sm:$0xff]
        %v1363 = vld [vmem:[%s1357 + $0x28] sm:$0xff]
        %v1364 = vld [vmem:[%s1357 + $0x30] sm:$0xff]
        %v1365 = vld [vmem:[%s1357 + $0x38] sm:$0xff]
        %v1366 = vld [vmem:[%s1357 + $0x40] sm:$0xff]
        %v1367 = vld [vmem:[%s1357 + $0x48] sm:$0xff]
        %v1368 = vld [vmem:[%s1357 + $0x50] sm:$0xff]
        %v1369 = vld [vmem:[%s1357 + $0x58] sm:$0xff]
        %v1370 = vld [vmem:[%s1357 + $0x60] sm:$0xff]
        %v1371 = vld [vmem:[%s1357 + $0x68] sm:$0xff]
        %v1372 = vld [vmem:[%s1357 + $0x70] sm:$0xff]
        %v1373 = vld [vmem:[%s1357 + $0x78] sm:$0xff]
        %v1374 = vld [vmem:[%s1357 + $0x80] sm:$0xff]
        %v1375 = vld [vmem:[%s1357 + $0x88] sm:$0xff]
        %v1376 = vld [vmem:[%s1357 + $0x90] sm:$0xff]
        %v1377 = vld [vmem:[%s1357 + $0x98] sm:$0xff]
        %v1378 = vld [vmem:[%s1357 + $0xa0] sm:$0xff]
        %v1379 = vld [vmem:[%s1357 + $0xa8] sm:$0xff]
        %v1380 = vld [vmem:[%s1357 + $0xb0] sm:$0xff]
        %v1381 = vld [vmem:[%s1357 + $0xb8] sm:$0xff]
        %v1383 = vsel %vm431, %v1356, 0
        %1385 = vmatprep.subr.mxu0 %v1359
        %1386 = vmatpush1.msra.mxu0 %v1358
        %1387 = vmatprep.subr.mxu0 %v1362
        %1388 = vmatpush1.msra.mxu0 %v1361
        %1389 = vmatprep.subr.mxu0 %v1365
        %1390 = vmatpush1.msra.mxu0 %v1364
        %1391 = vmatprep.subr.mxu0 %v1368
        %1392 = vmatpush1.msra.mxu0 %v1367
        %1393 = vmatprep.subr.mxu0 %v1371
        %1394 = vmatpush1.msra.mxu0 %v1370
        %1395 = vmatprep.subr.mxu0 %v1374
        %1396 = vmatpush1.msra.mxu0 %v1373
        %1397 = vmatprep.subr.mxu0 %v1377
        %1398 = vmatpush1.msra.mxu0 %v1376
        %1399 = vmatprep.subr.mxu0 %v1380
        %1400 = vmatpush1.msra.mxu0 %v1379
        %1401 = vmatprep.subr.mxu0 0.0
        %1402 = vmatpush1.msra.mxu0 0.0
        %1403 = vmatprep.subr.mxu0 0.0
        %1404 = vmatpush1.msra.mxu0 0.0
        %1405 = vmatprep.subr.mxu0 0.0
        %1406 = vmatpush1.msra.mxu0 0.0
        %1407 = vmatprep.subr.mxu0 0.0
        %1408 = vmatpush1.msra.mxu0 0.0
        %1409 = vmatprep.subr.mxu0 0.0
        %1410 = vmatpush1.msra.mxu0 0.0
        %1411 = vmatprep.subr.mxu0 0.0
        %1412 = vmatpush1.msra.mxu0 0.0
        %1413 = vmatprep.subr.mxu0 0.0
        %1414 = vmatpush1.msra.mxu0 0.0
        %1415 = vmatprep.subr.mxu0 0.0
        %1416 = vmatpush1.msra.mxu0 0.0
        %1417 = vmatprep.subr.mxu0 0.0
        %1418 = vmatpush1.msra.mxu0 0.0
        %1419 = vmatprep.subr.mxu0 0.0
        %1420 = vmatpush1.msra.mxu0 0.0
        %1421 = vmatprep.subr.mxu0 0.0
        %1422 = vmatpush1.msra.mxu0 0.0
        %1423 = vmatprep.subr.mxu0 0.0
        %1424 = vmatpush1.msra.mxu0 0.0
        %1425 = vmatprep.subr.mxu0 0.0
        %1426 = vmatpush1.msra.mxu0 0.0
        %1427 = vmatprep.subr.mxu0 0.0
        %1428 = vmatpush1.msra.mxu0 0.0
        %1429 = vmatprep.subr.mxu0 0.0
        %1430 = vmatpush1.msra.mxu0 0.0
        %1431 = vmatprep.subr.mxu0 0.0
        %1432 = vmatpush1.msra.mxu0 0.0
        %1433 = vmatprep.subr.mxu0 0.0
        %1434 = vmatpush1.msra.mxu0 0.0
        %1435 = vmatprep.subr.mxu0 0.0
        %1436 = vmatpush1.msra.mxu0 0.0
        %1437 = vmatprep.subr.mxu0 0.0
        %1438 = vmatpush1.msra.mxu0 0.0
        %1439 = vmatprep.subr.mxu0 0.0
        %1440 = vmatpush1.msra.mxu0 0.0
        %1441 = vmatprep.subr.mxu0 0.0
        %1442 = vmatpush1.msra.mxu0 0.0
        %1443 = vmatprep.subr.mxu0 0.0
        %1444 = vmatpush1.msra.mxu0 0.0
        %1445 = vmatprep.subr.mxu0 0.0
        %1446 = vmatpush1.msra.mxu0 0.0
        %1447 = vmatprep.subr.mxu0 0.0
        %1448 = vmatpush1.msra.mxu0 0.0
        %1449 = vmatprep.mubr.f32.mxu0 0.0
        %1450 = vmatmul.mubr.f32.gmra.mrb[0].mxu0 %v1383
        %v1451 = vpop.f32.mrb[0].mxu0
        %v1452 = vadd.f32 0.0, %v1451
        %v1453 = vpop.f32.mrb[0].mxu0
        %v1454 = vadd.f32 0.0, %v1453
        %1455 = vdwg.mxu0
        %1456 = vmatprep.subr.mxu0 0.0
        %1457 = vmatpush1.msra.mxu0 %v1360
        %1458 = vmatprep.subr.mxu0 0.0
        %1459 = vmatpush1.msra.mxu0 %v1363
        %1460 = vmatprep.subr.mxu0 0.0
        %1461 = vmatpush1.msra.mxu0 %v1366
        %1462 = vmatprep.subr.mxu0 0.0
        %1463 = vmatpush1.msra.mxu0 %v1369
        %1464 = vmatprep.subr.mxu0 0.0
        %1465 = vmatpush1.msra.mxu0 %v1372
        %1466 = vmatprep.subr.mxu0 0.0
        %1467 = vmatpush1.msra.mxu0 %v1375
        %1468 = vmatprep.subr.mxu0 0.0
        %1469 = vmatpush1.msra.mxu0 %v1378
        %1470 = vmatprep.subr.mxu0 0.0
        %1471 = vmatpush1.msra.mxu0 %v1381
        %1472 = vmatprep.subr.mxu0 0.0
        %1473 = vmatpush1.msra.mxu0 0.0
        %1474 = vmatprep.subr.mxu0 0.0
        %1475 = vmatpush1.msra.mxu0 0.0
        %1476 = vmatprep.subr.mxu0 0.0
        %1477 = vmatpush1.msra.mxu0 0.0
        %1478 = vmatprep.subr.mxu0 0.0
        %1479 = vmatpush1.msra.mxu0 0.0
        %1480 = vmatprep.subr.mxu0 0.0
        %1481 = vmatpush1.msra.mxu0 0.0
        %1482 = vmatprep.subr.mxu0 0.0
        %1483 = vmatpush1.msra.mxu0 0.0
        %1484 = vmatprep.subr.mxu0 0.0
        %1485 = vmatpush1.msra.mxu0 0.0
        %1486 = vmatprep.subr.mxu0 0.0
        %1487 = vmatpush1.msra.mxu0 0.0
        %1488 = vmatprep.subr.mxu0 0.0
        %1489 = vmatpush1.msra.mxu0 0.0
        %1490 = vmatprep.subr.mxu0 0.0
        %1491 = vmatpush1.msra.mxu0 0.0
        %1492 = vmatprep.subr.mxu0 0.0
        %1493 = vmatpush1.msra.mxu0 0.0
        %1494 = vmatprep.subr.mxu0 0.0
        %1495 = vmatpush1.msra.mxu0 0.0
        %1496 = vmatprep.subr.mxu0 0.0
        %1497 = vmatpush1.msra.mxu0 0.0
        %1498 = vmatprep.subr.mxu0 0.0
        %1499 = vmatpush1.msra.mxu0 0.0
        %1500 = vmatprep.subr.mxu0 0.0
        %1501 = vmatpush1.msra.mxu0 0.0
        %1502 = vmatprep.subr.mxu0 0.0
        %1503 = vmatpush1.msra.mxu0 0.0
        %1504 = vmatprep.subr.mxu0 0.0
        %1505 = vmatpush1.msra.mxu0 0.0
        %1506 = vmatprep.subr.mxu0 0.0
        %1507 = vmatpush1.msra.mxu0 0.0
        %1508 = vmatprep.subr.mxu0 0.0
        %1509 = vmatpush1.msra.mxu0 0.0
        %1510 = vmatprep.subr.mxu0 0.0
        %1511 = vmatpush1.msra.mxu0 0.0
        %1512 = vmatprep.subr.mxu0 0.0
        %1513 = vmatpush1.msra.mxu0 0.0
        %1514 = vmatprep.subr.mxu0 0.0
        %1515 = vmatpush1.msra.mxu0 0.0
        %1516 = vmatprep.subr.mxu0 0.0
        %1517 = vmatpush1.msra.mxu0 0.0
        %1518 = vmatprep.subr.mxu0 0.0
        %1519 = vmatpush1.msra.mxu0 0.0
        %1520 = vmatprep.mubr.f32.mxu0 0.0
        %1521 = vmatmul.mubr.f32.gmra.mrb[0].mxu0 %v1383
        %v1522 = vpop.f32.mrb[0].mxu0
        %v1523 = vadd.f32 0.0, %v1522
        %v1524 = vpop.f32.mrb[0].mxu0
        %1525 = vdwg.mxu0
        %s1526 = scalar_lea.vmem [#allocation2], 64
        %v1527 = vld [vmem:[%s1526] sm:$0xff]
        %v1528 = vld [vmem:[%s1526 + $0x8] sm:$0xff]
        %v1529 = vld [vmem:[%s1526 + $0x10] sm:$0xff]
        %v1530 = vld [vmem:[%s1526 + $0x18] sm:$0xff]
        %v1531 = vld [vmem:[%s1526 + $0x20] sm:$0xff]
        %v1532 = vld [vmem:[%s1526 + $0x28] sm:$0xff]
        %v1533 = vld [vmem:[%s1526 + $0x30] sm:$0xff]
        %v1534 = vld [vmem:[%s1526 + $0x38] sm:$0xff]
        %v1535 = vmul.f32 %v1452, %v426
        %v1536 = vmul.f32 %v1452, %v626
        %1538 = vrot.lane.b32.xlu0 %v1536, 64
        %v1539 = vpop.permute.xlu0 %1538
        %v1541 = vadd.f32 %v1535, %v1539
        %v1542 = vmul.f32 %v1454, %v426
        %v1543 = vmul.f32 %v1454, %v626
        %1545 = vrot.lane.b32.xlu0 %v1543, 64
        %v1546 = vpop.permute.xlu0 %1545
        %v1548 = vadd.f32 %v1542, %v1546
        %v1550 = vsel %vm641, %v1541, 0
        %v1553 = vsel %vm641, %v1548, 0
        %1555 = vmatprep.subr.mxu0 0.0
        %1556 = vmatpush1.xpose.msra.mxu0 %v1553
        %1557 = vmatprep.subr.mxu0 0.0
        %1558 = vmatpush1.xpose.msra.mxu0 0.0
        %1559 = vmatprep.subr.mxu0 0.0
        %1560 = vmatpush1.xpose.msra.mxu0 0.0
        %1561 = vmatprep.subr.mxu0 0.0
        %1562 = vmatpush1.xpose.msra.mxu0 0.0
        %1563 = vmatprep.subr.mxu0 0.0
        %1564 = vmatpush1.xpose.msra.mxu0 0.0
        %1565 = vmatprep.subr.mxu0 0.0
        %1566 = vmatpush1.xpose.msra.mxu0 0.0
        %1567 = vmatprep.subr.mxu0 0.0
        %1568 = vmatpush1.xpose.msra.mxu0 0.0
        %1569 = vmatprep.subr.mxu0 0.0
        %1570 = vmatpush1.xpose.msra.mxu0 0.0
        %1571 = vmatprep.subr.mxu0 0.0
        %1572 = vmatpush1.xpose.msra.mxu0 0.0
        %1573 = vmatprep.subr.mxu0 0.0
        %1574 = vmatpush1.xpose.msra.mxu0 0.0
        %1575 = vmatprep.subr.mxu0 0.0
        %1576 = vmatpush1.xpose.msra.mxu0 0.0
        %1577 = vmatprep.subr.mxu0 0.0
        %1578 = vmatpush1.xpose.msra.mxu0 0.0
        %1579 = vmatprep.subr.mxu0 0.0
        %1580 = vmatpush1.xpose.msra.mxu0 0.0
        %1581 = vmatprep.subr.mxu0 0.0
        %1582 = vmatpush1.xpose.msra.mxu0 0.0
        %1583 = vmatprep.subr.mxu0 0.0
        %1584 = vmatpush1.xpose.msra.mxu0 0.0
        %1585 = vmatprep.subr.mxu0 0.0
        %1586 = vmatpush1.xpose.msra.mxu0 0.0
        %1587 = vmatprep.subr.mxu0 0.0
        %1588 = vmatpush1.xpose.msra.mxu0 0.0
        %1589 = vmatprep.subr.mxu0 0.0
        %1590 = vmatpush1.xpose.msra.mxu0 0.0
        %1591 = vmatprep.subr.mxu0 0.0
        %1592 = vmatpush1.xpose.msra.mxu0 0.0
        %1593 = vmatprep.subr.mxu0 0.0
        %1594 = vmatpush1.xpose.msra.mxu0 0.0
        %1595 = vmatprep.subr.mxu0 0.0
        %1596 = vmatpush1.xpose.msra.mxu0 0.0
        %1597 = vmatprep.subr.mxu0 0.0
        %1598 = vmatpush1.xpose.msra.mxu0 0.0
        %1599 = vmatprep.subr.mxu0 0.0
        %1600 = vmatpush1.xpose.msra.mxu0 0.0
        %1601 = vmatprep.subr.mxu0 0.0
        %1602 = vmatpush1.xpose.msra.mxu0 0.0
        %1603 = vmatprep.subr.mxu0 0.0
        %1604 = vmatpush1.xpose.msra.mxu0 0.0
        %1605 = vmatprep.subr.mxu0 0.0
        %1606 = vmatpush1.xpose.msra.mxu0 0.0
        %1607 = vmatprep.subr.mxu0 0.0
        %1608 = vmatpush1.xpose.msra.mxu0 0.0
        %1609 = vmatprep.subr.mxu0 0.0
        %1610 = vmatpush1.xpose.msra.mxu0 0.0
        %1611 = vmatprep.subr.mxu0 0.0
        %1612 = vmatpush1.xpose.msra.mxu0 0.0
        %1613 = vmatprep.subr.mxu0 0.0
        %1614 = vmatpush1.xpose.msra.mxu0 0.0
        %1615 = vmatprep.subr.mxu0 0.0
        %1616 = vmatpush1.xpose.msra.mxu0 0.0
        %1617 = vmatprep.subr.mxu0 0.0
        %1618 = vmatpush1.xpose.msra.mxu0 0.0
        %1619 = vmatprep.mubr.f32.mxu0 0.0
        %1620 = vmatmul.mubr.f32.gmra.mrb[0].mxu0 %v1550
        %v1621 = vpop.f32.mrb[0].mxu0
        %v1622 = vadd.f32 %v425, %v1621
        %v1623 = vpop.f32.mrb[0].mxu0
        %1624 = vdwg.mxu0
        %v1625 = vsel %vm718, %v1622, -inf
        %1626 = vmax.xlane.f32.xlu0 %v1625
        %v1627 = vpop.xlane.xlu0 %1626
        %v1628 = vsub.f32 %v1622, %v1627
        %v1629 = vmul.f32 %v1628, 1.442695
        %v1630 = vpow.pop %v1629
        %v1631 = vsel %vm718, %v1630, 0.0
        %1632 = vadd.xlane.f32.xlu0 %v1631
        %v1633 = vpop.xlane.xlu0 %1632
        %v1634 = vrcp.pop %v1633
        %v1635 = vmul.f32 %v1630, %v1634
        %v1637 = vsel %vm718, %v1635, 0
        %1639 = vmatprep.subr.mxu0 0.0
        %1640 = vmatpush1.msra.mxu0 %v1523
        %1641 = vmatprep.subr.mxu0 0.0
        %1642 = vmatpush1.msra.mxu0 0.0
        %1643 = vmatprep.subr.mxu0 0.0
        %1644 = vmatpush1.msra.mxu0 0.0
        %1645 = vmatprep.subr.mxu0 0.0
        %1646 = vmatpush1.msra.mxu0 0.0
        %1647 = vmatprep.subr.mxu0 0.0
        %1648 = vmatpush1.msra.mxu0 0.0
        %1649 = vmatprep.subr.mxu0 0.0
        %1650 = vmatpush1.msra.mxu0 0.0
        %1651 = vmatprep.subr.mxu0 0.0
        %1652 = vmatpush1.msra.mxu0 0.0
        %1653 = vmatprep.subr.mxu0 0.0
        %1654 = vmatpush1.msra.mxu0 0.0
        %1655 = vmatprep.subr.mxu0 0.0
        %1656 = vmatpush1.msra.mxu0 0.0
        %1657 = vmatprep.subr.mxu0 0.0
        %1658 = vmatpush1.msra.mxu0 0.0
        %1659 = vmatprep.subr.mxu0 0.0
        %1660 = vmatpush1.msra.mxu0 0.0
        %1661 = vmatprep.subr.mxu0 0.0
        %1662 = vmatpush1.msra.mxu0 0.0
        %1663 = vmatprep.subr.mxu0 0.0
        %1664 = vmatpush1.msra.mxu0 0.0
        %1665 = vmatprep.subr.mxu0 0.0
        %1666 = vmatpush1.msra.mxu0 0.0
        %1667 = vmatprep.subr.mxu0 0.0
        %1668 = vmatpush1.msra.mxu0 0.0
        %1669 = vmatprep.subr.mxu0 0.0
        %1670 = vmatpush1.msra.mxu0 0.0
        %1671 = vmatprep.subr.mxu0 0.0
        %1672 = vmatpush1.msra.mxu0 0.0
        %1673 = vmatprep.subr.mxu0 0.0
        %1674 = vmatpush1.msra.mxu0 0.0
        %1675 = vmatprep.subr.mxu0 0.0
        %1676 = vmatpush1.msra.mxu0 0.0
        %1677 = vmatprep.subr.mxu0 0.0
        %1678 = vmatpush1.msra.mxu0 0.0
        %1679 = vmatprep.subr.mxu0 0.0
        %1680 = vmatpush1.msra.mxu0 0.0
        %1681 = vmatprep.subr.mxu0 0.0
        %1682 = vmatpush1.msra.mxu0 0.0
        %1683 = vmatprep.subr.mxu0 0.0
        %1684 = vmatpush1.msra.mxu0 0.0
        %1685 = vmatprep.subr.mxu0 0.0
        %1686 = vmatpush1.msra.mxu0 0.0
        %1687 = vmatprep.subr.mxu0 0.0
        %1688 = vmatpush1.msra.mxu0 0.0
        %1689 = vmatprep.subr.mxu0 0.0
        %1690 = vmatpush1.msra.mxu0 0.0
        %1691 = vmatprep.subr.mxu0 0.0
        %1692 = vmatpush1.msra.mxu0 0.0
        %1693 = vmatprep.subr.mxu0 0.0
        %1694 = vmatpush1.msra.mxu0 0.0
        %1695 = vmatprep.subr.mxu0 0.0
        %1696 = vmatpush1.msra.mxu0 0.0
        %1697 = vmatprep.subr.mxu0 0.0
        %1698 = vmatpush1.msra.mxu0 0.0
        %1699 = vmatprep.subr.mxu0 0.0
        %1700 = vmatpush1.msra.mxu0 0.0
        %1701 = vmatprep.subr.mxu0 0.0
        %1702 = vmatpush1.msra.mxu0 0.0
        %1703 = vmatprep.mubr.f32.mxu0 0.0
        %1704 = vmatmul.mubr.f32.gmra.mrb[0].mxu0 %v1637
        %v1705 = vpop.f32.mrb[0].mxu0
        %v1706 = vadd.f32 0.0, %v1705
        %v1707 = vpop.f32.mrb[0].mxu0
        %1708 = vdwg.mxu0
        %v1709 = vmul.f32 %v1452, %v805
        %v1710 = vmul.f32 %v1452, %v809
        %1712 = vrot.lane.b32.xlu0 %v1710, 64
        %v1713 = vpop.permute.xlu0 %1712
        %v1715 = vadd.f32 %v1709, %v1713
        %v1716 = vmul.f32 %v1454, %v805
        %v1717 = vmul.f32 %v1454, %v809
        %1719 = vrot.lane.b32.xlu0 %v1717, 64
        %v1720 = vpop.permute.xlu0 %1719
        %v1722 = vadd.f32 %v1716, %v1720
        %1724 = vrot.lane.b32.xlu0 %v1715, 96
        %v1725 = vpop.permute.xlu0 %1724
        %1727 = vrot.lane.b32.xlu0 %v1722, 96
        %v1728 = vpop.permute.xlu0 %1727
        %v1729 = vsel %vm641, %v1725, 0
        %v1731 = vsel %vm641, %v1728, 0
        %1733 = vmatprep.subr.mxu0 0.0
        %1734 = vmatpush1.xpose.msra.mxu0 %v1731
        %1735 = vmatprep.subr.mxu0 0.0
        %1736 = vmatpush1.xpose.msra.mxu0 0.0
        %1737 = vmatprep.subr.mxu0 0.0
        %1738 = vmatpush1.xpose.msra.mxu0 0.0
        %1739 = vmatprep.subr.mxu0 0.0
        %1740 = vmatpush1.xpose.msra.mxu0 0.0
        %1741 = vmatprep.subr.mxu0 0.0
        %1742 = vmatpush1.xpose.msra.mxu0 0.0
        %1743 = vmatprep.subr.mxu0 0.0
        %1744 = vmatpush1.xpose.msra.mxu0 0.0
        %1745 = vmatprep.subr.mxu0 0.0
        %1746 = vmatpush1.xpose.msra.mxu0 0.0
        %1747 = vmatprep.subr.mxu0 0.0
        %1748 = vmatpush1.xpose.msra.mxu0 0.0
        %1749 = vmatprep.subr.mxu0 0.0
        %1750 = vmatpush1.xpose.msra.mxu0 0.0
        %1751 = vmatprep.subr.mxu0 0.0
        %1752 = vmatpush1.xpose.msra.mxu0 0.0
        %1753 = vmatprep.subr.mxu0 0.0
        %1754 = vmatpush1.xpose.msra.mxu0 0.0
        %1755 = vmatprep.subr.mxu0 0.0
        %1756 = vmatpush1.xpose.msra.mxu0 0.0
        %1757 = vmatprep.subr.mxu0 0.0
        %1758 = vmatpush1.xpose.msra.mxu0 0.0
        %1759 = vmatprep.subr.mxu0 0.0
        %1760 = vmatpush1.xpose.msra.mxu0 0.0
        %1761 = vmatprep.subr.mxu0 0.0
        %1762 = vmatpush1.xpose.msra.mxu0 0.0
        %1763 = vmatprep.subr.mxu0 0.0
        %1764 = vmatpush1.xpose.msra.mxu0 0.0
        %1765 = vmatprep.subr.mxu0 0.0
        %1766 = vmatpush1.xpose.msra.mxu0 0.0
        %1767 = vmatprep.subr.mxu0 0.0
        %1768 = vmatpush1.xpose.msra.mxu0 0.0
        %1769 = vmatprep.subr.mxu0 0.0
        %1770 = vmatpush1.xpose.msra.mxu0 0.0
        %1771 = vmatprep.subr.mxu0 0.0
        %1772 = vmatpush1.xpose.msra.mxu0 0.0
        %1773 = vmatprep.subr.mxu0 0.0
        %1774 = vmatpush1.xpose.msra.mxu0 0.0
        %1775 = vmatprep.subr.mxu0 0.0
        %1776 = vmatpush1.xpose.msra.mxu0 0.0
        %1777 = vmatprep.subr.mxu0 0.0
        %1778 = vmatpush1.xpose.msra.mxu0 0.0
        %1779 = vmatprep.subr.mxu0 0.0
        %1780 = vmatpush1.xpose.msra.mxu0 0.0
        %1781 = vmatprep.subr.mxu0 0.0
        %1782 = vmatpush1.xpose.msra.mxu0 0.0
        %1783 = vmatprep.subr.mxu0 0.0
        %1784 = vmatpush1.xpose.msra.mxu0 0.0
        %1785 = vmatprep.subr.mxu0 0.0
        %1786 = vmatpush1.xpose.msra.mxu0 0.0
        %1787 = vmatprep.subr.mxu0 0.0
        %1788 = vmatpush1.xpose.msra.mxu0 0.0
        %1789 = vmatprep.subr.mxu0 0.0
        %1790 = vmatpush1.xpose.msra.mxu0 0.0
        %1791 = vmatprep.subr.mxu0 0.0
        %1792 = vmatpush1.xpose.msra.mxu0 0.0
        %1793 = vmatprep.subr.mxu0 0.0
        %1794 = vmatpush1.xpose.msra.mxu0 0.0
        %1795 = vmatprep.subr.mxu0 0.0
        %1796 = vmatpush1.xpose.msra.mxu0 0.0
        %1797 = vmatprep.mubr.f32.mxu0 0.0
        %1798 = vmatmul.mubr.f32.gmra.mrb[0].mxu0 %v1729
        %v1799 = vpop.f32.mrb[0].mxu0
        %v1800 = vadd.f32 %v425, %v1799
        %v1801 = vpop.f32.mrb[0].mxu0
        %1802 = vdwg.mxu0
        %v1803 = vsel %vm718, %v1800, -inf
        %1804 = vmax.xlane.f32.xlu0 %v1803
        %v1805 = vpop.xlane.xlu0 %1804
        %v1806 = vsub.f32 %v1800, %v1805
        %v1807 = vmul.f32 %v1806, 1.442695
        %v1808 = vpow.pop %v1807
        %v1809 = vsel %vm718, %v1808, 0.0
        %1810 = vadd.xlane.f32.xlu0 %v1809
        %v1811 = vpop.xlane.xlu0 %1810
        %v1812 = vrcp.pop %v1811
        %v1813 = vmul.f32 %v1808, %v1812
        %1815 = vrot.lane.b32.xlu0 %v1523, 96
        %v1816 = vpop.permute.xlu0 %1815
        %v1819 = vsel %vm718, %v1813, 0
        %1821 = vmatprep.subr.mxu0 0.0
        %1822 = vmatpush1.msra.mxu0 %v1816
        %1823 = vmatprep.subr.mxu0 0.0
        %1824 = vmatpush1.msra.mxu0 0.0
        %1825 = vmatprep.subr.mxu0 0.0
        %1826 = vmatpush1.msra.mxu0 0.0
        %1827 = vmatprep.subr.mxu0 0.0
        %1828 = vmatpush1.msra.mxu0 0.0
        %1829 = vmatprep.subr.mxu0 0.0
        %1830 = vmatpush1.msra.mxu0 0.0
        %1831 = vmatprep.subr.mxu0 0.0
        %1832 = vmatpush1.msra.mxu0 0.0
        %1833 = vmatprep.subr.mxu0 0.0
        %1834 = vmatpush1.msra.mxu0 0.0
        %1835 = vmatprep.subr.mxu0 0.0
        %1836 = vmatpush1.msra.mxu0 0.0
        %1837 = vmatprep.subr.mxu0 0.0
        %1838 = vmatpush1.msra.mxu0 0.0
        %1839 = vmatprep.subr.mxu0 0.0
        %1840 = vmatpush1.msra.mxu0 0.0
        %1841 = vmatprep.subr.mxu0 0.0
        %1842 = vmatpush1.msra.mxu0 0.0
        %1843 = vmatprep.subr.mxu0 0.0
        %1844 = vmatpush1.msra.mxu0 0.0
        %1845 = vmatprep.subr.mxu0 0.0
        %1846 = vmatpush1.msra.mxu0 0.0
        %1847 = vmatprep.subr.mxu0 0.0
        %1848 = vmatpush1.msra.mxu0 0.0
        %1849 = vmatprep.subr.mxu0 0.0
        %1850 = vmatpush1.msra.mxu0 0.0
        %1851 = vmatprep.subr.mxu0 0.0
        %1852 = vmatpush1.msra.mxu0 0.0
        %1853 = vmatprep.subr.mxu0 0.0
        %1854 = vmatpush1.msra.mxu0 0.0
        %1855 = vmatprep.subr.mxu0 0.0
        %1856 = vmatpush1.msra.mxu0 0.0
        %1857 = vmatprep.subr.mxu0 0.0
        %1858 = vmatpush1.msra.mxu0 0.0
        %1859 = vmatprep.subr.mxu0 0.0
        %1860 = vmatpush1.msra.mxu0 0.0
        %1861 = vmatprep.subr.mxu0 0.0
        %1862 = vmatpush1.msra.mxu0 0.0
        %1863 = vmatprep.subr.mxu0 0.0
        %1864 = vmatpush1.msra.mxu0 0.0
        %1865 = vmatprep.subr.mxu0 0.0
        %1866 = vmatpush1.msra.mxu0 0.0
        %1867 = vmatprep.subr.mxu0 0.0
        %1868 = vmatpush1.msra.mxu0 0.0
        %1869 = vmatprep.subr.mxu0 0.0
        %1870 = vmatpush1.msra.mxu0 0.0
        %1871 = vmatprep.subr.mxu0 0.0
        %1872 = vmatpush1.msra.mxu0 0.0
        %1873 = vmatprep.subr.mxu0 0.0
        %1874 = vmatpush1.msra.mxu0 0.0
        %1875 = vmatprep.subr.mxu0 0.0
        %1876 = vmatpush1.msra.mxu0 0.0
        %1877 = vmatprep.subr.mxu0 0.0
        %1878 = vmatpush1.msra.mxu0 0.0
        %1879 = vmatprep.subr.mxu0 0.0
        %1880 = vmatpush1.msra.mxu0 0.0
        %1881 = vmatprep.subr.mxu0 0.0
        %1882 = vmatpush1.msra.mxu0 0.0
        %1883 = vmatprep.subr.mxu0 0.0
        %1884 = vmatpush1.msra.mxu0 0.0
        %1885 = vmatprep.mubr.f32.mxu0 0.0
        %1886 = vmatmul.mubr.f32.gmra.mrb[0].mxu0 %v1819
        %v1887 = vpop.f32.mrb[0].mxu0
        %v1888 = vadd.f32 0.0, %v1887
        %v1889 = vpop.f32.mrb[0].mxu0
        %1890 = vdwg.mxu0
        %v1892 = vsel %vm641, %v1888, 0
        %1894 = vmatprep.subr.mxu0 0.0
        %1895 = vmatpush1.msra.mxu0 %v1531
        %1896 = vmatprep.subr.mxu0 0.0
        %1897 = vmatpush1.msra.mxu0 %v1532
        %1898 = vmatprep.subr.mxu0 0.0
        %1899 = vmatpush1.msra.mxu0 %v1533
        %1900 = vmatprep.subr.mxu0 0.0
        %1901 = vmatpush1.msra.mxu0 %v1534
        %1902 = vmatprep.subr.mxu0 0.0
        %1903 = vmatpush1.msra.mxu0 0.0
        %1904 = vmatprep.subr.mxu0 0.0
        %1905 = vmatpush1.msra.mxu0 0.0
        %1906 = vmatprep.subr.mxu0 0.0
        %1907 = vmatpush1.msra.mxu0 0.0
        %1908 = vmatprep.subr.mxu0 0.0
        %1909 = vmatpush1.msra.mxu0 0.0
        %1910 = vmatprep.subr.mxu0 0.0
        %1911 = vmatpush1.msra.mxu0 0.0
        %1912 = vmatprep.subr.mxu0 0.0
        %1913 = vmatpush1.msra.mxu0 0.0
        %1914 = vmatprep.subr.mxu0 0.0
        %1915 = vmatpush1.msra.mxu0 0.0
        %1916 = vmatprep.subr.mxu0 0.0
        %1917 = vmatpush1.msra.mxu0 0.0
        %1918 = vmatprep.subr.mxu0 0.0
        %1919 = vmatpush1.msra.mxu0 0.0
        %1920 = vmatprep.subr.mxu0 0.0
        %1921 = vmatpush1.msra.mxu0 0.0
        %1922 = vmatprep.subr.mxu0 0.0
        %1923 = vmatpush1.msra.mxu0 0.0
        %1924 = vmatprep.subr.mxu0 0.0
        %1925 = vmatpush1.msra.mxu0 0.0
        %1926 = vmatprep.subr.mxu0 0.0
        %1927 = vmatpush1.msra.mxu0 0.0
        %1928 = vmatprep.subr.mxu0 0.0
        %1929 = vmatpush1.msra.mxu0 0.0
        %1930 = vmatprep.subr.mxu0 0.0
        %1931 = vmatpush1.msra.mxu0 0.0
        %1932 = vmatprep.subr.mxu0 0.0
        %1933 = vmatpush1.msra.mxu0 0.0
        %1934 = vmatprep.subr.mxu0 0.0
        %1935 = vmatpush1.msra.mxu0 0.0
        %1936 = vmatprep.subr.mxu0 0.0
        %1937 = vmatpush1.msra.mxu0 0.0
        %1938 = vmatprep.subr.mxu0 0.0
        %1939 = vmatpush1.msra.mxu0 0.0
        %1940 = vmatprep.subr.mxu0 0.0
        %1941 = vmatpush1.msra.mxu0 0.0
        %1942 = vmatprep.subr.mxu0 0.0
        %1943 = vmatpush1.msra.mxu0 0.0
        %1944 = vmatprep.subr.mxu0 0.0
        %1945 = vmatpush1.msra.mxu0 0.0
        %1946 = vmatprep.subr.mxu0 0.0
        %1947 = vmatpush1.msra.mxu0 0.0
        %1948 = vmatprep.subr.mxu0 0.0
        %1949 = vmatpush1.msra.mxu0 0.0
        %1950 = vmatprep.subr.mxu0 0.0
        %1951 = vmatpush1.msra.mxu0 0.0
        %1952 = vmatprep.subr.mxu0 0.0
        %1953 = vmatpush1.msra.mxu0 0.0
        %1954 = vmatprep.subr.mxu0 0.0
        %1955 = vmatpush1.msra.mxu0 0.0
        %1956 = vmatprep.subr.mxu0 0.0
        %1957 = vmatpush1.msra.mxu0 0.0
        %1958 = vmatprep.mubr.f32.mxu0 0.0
        %1959 = vmatmul.mubr.f32.gmra.mrb[0].mxu0 %v1892
        %v1960 = vpop.f32.mrb[0].mxu0
        %v1961 = vadd.f32 0.0, %v1960
        %v1962 = vpop.f32.mrb[0].mxu0
        %1963 = vdwg.mxu0
        %v1965 = vsel %vm641, %v1706, 0
        %1967 = vmatprep.subr.mxu0 0.0
        %1968 = vmatpush1.msra.mxu0 %v1527
        %1969 = vmatprep.subr.mxu0 0.0
        %1970 = vmatpush1.msra.mxu0 %v1528
        %1971 = vmatprep.subr.mxu0 0.0
        %1972 = vmatpush1.msra.mxu0 %v1529
        %1973 = vmatprep.subr.mxu0 0.0
        %1974 = vmatpush1.msra.mxu0 %v1530
        %1975 = vmatprep.subr.mxu0 0.0
        %1976 = vmatpush1.msra.mxu0 0.0
        %1977 = vmatprep.subr.mxu0 0.0
        %1978 = vmatpush1.msra.mxu0 0.0
        %1979 = vmatprep.subr.mxu0 0.0
        %1980 = vmatpush1.msra.mxu0 0.0
        %1981 = vmatprep.subr.mxu0 0.0
        %1982 = vmatpush1.msra.mxu0 0.0
        %1983 = vmatprep.subr.mxu0 0.0
        %1984 = vmatpush1.msra.mxu0 0.0
        %1985 = vmatprep.subr.mxu0 0.0
        %1986 = vmatpush1.msra.mxu0 0.0
        %1987 = vmatprep.subr.mxu0 0.0
        %1988 = vmatpush1.msra.mxu0 0.0
        %1989 = vmatprep.subr.mxu0 0.0
        %1990 = vmatpush1.msra.mxu0 0.0
        %1991 = vmatprep.subr.mxu0 0.0
        %1992 = vmatpush1.msra.mxu0 0.0
        %1993 = vmatprep.subr.mxu0 0.0
        %1994 = vmatpush1.msra.mxu0 0.0
        %1995 = vmatprep.subr.mxu0 0.0
        %1996 = vmatpush1.msra.mxu0 0.0
        %1997 = vmatprep.subr.mxu0 0.0
        %1998 = vmatpush1.msra.mxu0 0.0
        %1999 = vmatprep.subr.mxu0 0.0
        %2000 = vmatpush1.msra.mxu0 0.0
        %2001 = vmatprep.subr.mxu0 0.0
        %2002 = vmatpush1.msra.mxu0 0.0
        %2003 = vmatprep.subr.mxu0 0.0
        %2004 = vmatpush1.msra.mxu0 0.0
        %2005 = vmatprep.subr.mxu0 0.0
        %2006 = vmatpush1.msra.mxu0 0.0
        %2007 = vmatprep.subr.mxu0 0.0
        %2008 = vmatpush1.msra.mxu0 0.0
        %2009 = vmatprep.subr.mxu0 0.0
        %2010 = vmatpush1.msra.mxu0 0.0
        %2011 = vmatprep.subr.mxu0 0.0
        %2012 = vmatpush1.msra.mxu0 0.0
        %2013 = vmatprep.subr.mxu0 0.0
        %2014 = vmatpush1.msra.mxu0 0.0
        %2015 = vmatprep.subr.mxu0 0.0
        %2016 = vmatpush1.msra.mxu0 0.0
        %2017 = vmatprep.subr.mxu0 0.0
        %2018 = vmatpush1.msra.mxu0 0.0
        %2019 = vmatprep.subr.mxu0 0.0
        %2020 = vmatpush1.msra.mxu0 0.0
        %2021 = vmatprep.subr.mxu0 0.0
        %2022 = vmatpush1.msra.mxu0 0.0
        %2023 = vmatprep.subr.mxu0 0.0
        %2024 = vmatpush1.msra.mxu0 0.0
        %2025 = vmatprep.subr.mxu0 0.0
        %2026 = vmatpush1.msra.mxu0 0.0
        %2027 = vmatprep.subr.mxu0 0.0
        %2028 = vmatpush1.msra.mxu0 0.0
        %2029 = vmatprep.subr.mxu0 0.0
        %2030 = vmatpush1.msra.mxu0 0.0
        %2031 = vmatprep.mubr.f32.mxu0 0.0
        %2032 = vmatmul.mubr.f32.gmra.mrb[0].mxu0 %v1965
        %v2033 = vpop.f32.mrb[0].mxu0
        %v2034 = vadd.f32 %v1961, %v2033
        %v2035 = vpop.f32.mrb[0].mxu0
        %2036 = vdwg.mxu0
        %v2037 = vadd.f32 %v1339, %v2034
        %s2038 = scalar_lea.vmem %s7, 1
        %v2039 = vld [vmem:[%s2038] sm:$0x1]
        %v2040 = vmul.f32 %v2037, %v2037
        %v2041 = vsel %vm431, %v2040, 0.0
        %2042 = vadd.xlane.f32.xlu0 %v2041
        %v2043 = vpop.xlane.xlu0 %2042
        %v2044 = vmul.f32 %v2043, %v435
        %v2045 = vadd.f32 %v2044, 1e-06
        %v2046 = vrsqrt.pop %v2045
        %v2047 = vmul.f32 %v2037, %v2046
        %v2049 = vlaneseq
        %v2050 = vshrl.u32 %v2049, 7
        %v2051 = vsub.s32 0, %v2050
        %v2052 = vrot.slane %v2039, %v2051
        %v2054 = vmul.f32 %v2047, %v2052
        %s2055 = scalar_lea.vmem %s8, 128
        %v2056 = vld [vmem:[%s2055] sm:$0xff]
        %v2057 = vld [vmem:[%s2055 + $0x8] sm:$0xff]
        %v2058 = vld [vmem:[%s2055 + $0x10] sm:$0xff]
        %v2059 = vld [vmem:[%s2055 + $0x18] sm:$0xff]
        %v2060 = vld [vmem:[%s2055 + $0x20] sm:$0xff]
        %v2061 = vld [vmem:[%s2055 + $0x28] sm:$0xff]
        %v2062 = vld [vmem:[%s2055 + $0x30] sm:$0xff]
        %v2063 = vld [vmem:[%s2055 + $0x38] sm:$0xff]
        %v2064 = vld [vmem:[%s2055 + $0x40] sm:$0xff]
        %v2065 = vld [vmem:[%s2055 + $0x48] sm:$0xff]
        %v2066 = vld [vmem:[%s2055 + $0x50] sm:$0xff]
        %v2067 = vld [vmem:[%s2055 + $0x58] sm:$0xff]
        %v2068 = vld [vmem:[%s2055 + $0x60] sm:$0xff]
        %v2069 = vld [vmem:[%s2055 + $0x68] sm:$0xff]
        %v2070 = vld [vmem:[%s2055 + $0x70] sm:$0xff]
        %v2071 = vld [vmem:[%s2055 + $0x78] sm:$0xff]
        %v2073 = vsel %vm431, %v2054, 0
        %2075 = vmatprep.subr.mxu0 %v2057
        %2076 = vmatpush1.msra.mxu0 %v2056
        %2077 = vmatprep.subr.mxu0 %v2059
        %2078 = vmatpush1.msra.mxu0 %v2058
        %2079 = vmatprep.subr.mxu0 %v2061
        %2080 = vmatpush1.msra.mxu0 %v2060
        %2081 = vmatprep.subr.mxu0 %v2063
        %2082 = vmatpush1.msra.mxu0 %v2062
        %2083 = vmatprep.subr.mxu0 %v2065
        %2084 = vmatpush1.msra.mxu0 %v2064
        %2085 = vmatprep.subr.mxu0 %v2067
        %2086 = vmatpush1.msra.mxu0 %v2066
        %2087 = vmatprep.subr.mxu0 %v2069
        %2088 = vmatpush1.msra.mxu0 %v2068
        %2089 = vmatprep.subr.mxu0 %v2071
        %2090 = vmatpush1.msra.mxu0 %v2070
        %2091 = vmatprep.subr.mxu0 0.0
        %2092 = vmatpush1.msra.mxu0 0.0
        %2093 = vmatprep.subr.mxu0 0.0
        %2094 = vmatpush1.msra.mxu0 0.0
        %2095 = vmatprep.subr.mxu0 0.0
        %2096 = vmatpush1.msra.mxu0 0.0
        %2097 = vmatprep.subr.mxu0 0.0
        %2098 = vmatpush1.msra.mxu0 0.0
        %2099 = vmatprep.subr.mxu0 0.0
        %2100 = vmatpush1.msra.mxu0 0.0
        %2101 = vmatprep.subr.mxu0 0.0
        %2102 = vmatpush1.msra.mxu0 0.0
        %2103 = vmatprep.subr.mxu0 0.0
        %2104 = vmatpush1.msra.mxu0 0.0
        %2105 = vmatprep.subr.mxu0 0.0
        %2106 = vmatpush1.msra.mxu0 0.0
        %2107 = vmatprep.subr.mxu0 0.0
        %2108 = vmatpush1.msra.mxu0 0.0
        %2109 = vmatprep.subr.mxu0 0.0
        %2110 = vmatpush1.msra.mxu0 0.0
        %2111 = vmatprep.subr.mxu0 0.0
        %2112 = vmatpush1.msra.mxu0 0.0
        %2113 = vmatprep.subr.mxu0 0.0
        %2114 = vmatpush1.msra.mxu0 0.0
        %2115 = vmatprep.subr.mxu0 0.0
        %2116 = vmatpush1.msra.mxu0 0.0
        %2117 = vmatprep.subr.mxu0 0.0
        %2118 = vmatpush1.msra.mxu0 0.0
        %2119 = vmatprep.subr.mxu0 0.0
        %2120 = vmatpush1.msra.mxu0 0.0
        %2121 = vmatprep.subr.mxu0 0.0
        %2122 = vmatpush1.msra.mxu0 0.0
        %2123 = vmatprep.subr.mxu0 0.0
        %2124 = vmatpush1.msra.mxu0 0.0
        %2125 = vmatprep.subr.mxu0 0.0
        %2126 = vmatpush1.msra.mxu0 0.0
        %2127 = vmatprep.subr.mxu0 0.0
        %2128 = vmatpush1.msra.mxu0 0.0
        %2129 = vmatprep.subr.mxu0 0.0
        %2130 = vmatpush1.msra.mxu0 0.0
        %2131 = vmatprep.subr.mxu0 0.0
        %2132 = vmatpush1.msra.mxu0 0.0
        %2133 = vmatprep.subr.mxu0 0.0
        %2134 = vmatpush1.msra.mxu0 0.0
        %2135 = vmatprep.subr.mxu0 0.0
        %2136 = vmatpush1.msra.mxu0 0.0
        %2137 = vmatprep.subr.mxu0 0.0
        %2138 = vmatpush1.msra.mxu0 0.0
        %2139 = vmatprep.mubr.f32.mxu0 0.0
        %2140 = vmatmul.mubr.f32.gmra.mrb[0].mxu0 %v2073
        %v2141 = vpop.f32.mrb[0].mxu0
        %v2142 = vadd.f32 0.0, %v2141
        %v2143 = vpop.f32.mrb[0].mxu0
        %v2144 = vadd.f32 0.0, %v2143
        %2145 = vdwg.mxu0
        %v2146 = vxor.u32 %v2142, 2147483648
        %v2147 = vmul.f32 %v2146, 1.442695
        %v2148 = vpow.pop %v2147
        %v2149 = vadd.f32 %v2148, 1.0
        %v2150 = vrcp.pop %v2149
        %v2151 = vmul.f32 1.0, %v2150
        %v2152 = vmul.f32 %v2142, %v2151
        %v2153 = vmul.f32 %v2152, %v2144
        %s2154 = scalar_lea.vmem %s9, 128
        %v2155 = vld [vmem:[%s2154] sm:$0xff]
        %v2156 = vld [vmem:[%s2154 + $0x8] sm:$0xff]
        %v2157 = vld [vmem:[%s2154 + $0x10] sm:$0xff]
        %v2158 = vld [vmem:[%s2154 + $0x18] sm:$0xff]
        %v2159 = vld [vmem:[%s2154 + $0x20] sm:$0xff]
        %v2160 = vld [vmem:[%s2154 + $0x28] sm:$0xff]
        %v2161 = vld [vmem:[%s2154 + $0x30] sm:$0xff]
        %v2162 = vld [vmem:[%s2154 + $0x38] sm:$0xff]
        %v2163 = vld [vmem:[%s2154 + $0x40] sm:$0xff]
        %v2164 = vld [vmem:[%s2154 + $0x48] sm:$0xff]
        %v2165 = vld [vmem:[%s2154 + $0x50] sm:$0xff]
        %v2166 = vld [vmem:[%s2154 + $0x58] sm:$0xff]
        %v2167 = vld [vmem:[%s2154 + $0x60] sm:$0xff]
        %v2168 = vld [vmem:[%s2154 + $0x68] sm:$0xff]
        %v2169 = vld [vmem:[%s2154 + $0x70] sm:$0xff]
        %v2170 = vld [vmem:[%s2154 + $0x78] sm:$0xff]
        %2171 = vmatprep.subr.mxu0 0.0
        %2172 = vmatpush1.msra.mxu0 %v2155
        %2173 = vmatprep.subr.mxu0 0.0
        %2174 = vmatpush1.msra.mxu0 %v2156
        %2175 = vmatprep.subr.mxu0 0.0
        %2176 = vmatpush1.msra.mxu0 %v2157
        %2177 = vmatprep.subr.mxu0 0.0
        %2178 = vmatpush1.msra.mxu0 %v2158
        %2179 = vmatprep.subr.mxu0 0.0
        %2180 = vmatpush1.msra.mxu0 %v2159
        %2181 = vmatprep.subr.mxu0 0.0
        %2182 = vmatpush1.msra.mxu0 %v2160
        %2183 = vmatprep.subr.mxu0 0.0
        %2184 = vmatpush1.msra.mxu0 %v2161
        %2185 = vmatprep.subr.mxu0 0.0
        %2186 = vmatpush1.msra.mxu0 %v2162
        %2187 = vmatprep.subr.mxu0 0.0
        %2188 = vmatpush1.msra.mxu0 %v2163
        %2189 = vmatprep.subr.mxu0 0.0
        %2190 = vmatpush1.msra.mxu0 %v2164
        %2191 = vmatprep.subr.mxu0 0.0
        %2192 = vmatpush1.msra.mxu0 %v2165
        %2193 = vmatprep.subr.mxu0 0.0
        %2194 = vmatpush1.msra.mxu0 %v2166
        %2195 = vmatprep.subr.mxu0 0.0
        %2196 = vmatpush1.msra.mxu0 %v2167
        %2197 = vmatprep.subr.mxu0 0.0
        %2198 = vmatpush1.msra.mxu0 %v2168
        %2199 = vmatprep.subr.mxu0 0.0
        %2200 = vmatpush1.msra.mxu0 %v2169
        %2201 = vmatprep.subr.mxu0 0.0
        %2202 = vmatpush1.msra.mxu0 %v2170
        %2203 = vmatprep.subr.mxu0 0.0
        %2204 = vmatpush1.msra.mxu0 0.0
        %2205 = vmatprep.subr.mxu0 0.0
        %2206 = vmatpush1.msra.mxu0 0.0
        %2207 = vmatprep.subr.mxu0 0.0
        %2208 = vmatpush1.msra.mxu0 0.0
        %2209 = vmatprep.subr.mxu0 0.0
        %2210 = vmatpush1.msra.mxu0 0.0
        %2211 = vmatprep.subr.mxu0 0.0
        %2212 = vmatpush1.msra.mxu0 0.0
        %2213 = vmatprep.subr.mxu0 0.0
        %2214 = vmatpush1.msra.mxu0 0.0
        %2215 = vmatprep.subr.mxu0 0.0
        %2216 = vmatpush1.msra.mxu0 0.0
        %2217 = vmatprep.subr.mxu0 0.0
        %2218 = vmatpush1.msra.mxu0 0.0
        %2219 = vmatprep.subr.mxu0 0.0
        %2220 = vmatpush1.msra.mxu0 0.0
        %2221 = vmatprep.subr.mxu0 0.0
        %2222 = vmatpush1.msra.mxu0 0.0
        %2223 = vmatprep.subr.mxu0 0.0
        %2224 = vmatpush1.msra.mxu0 0.0
        %2225 = vmatprep.subr.mxu0 0.0
        %2226 = vmatpush1.msra.mxu0 0.0
        %2227 = vmatprep.subr.mxu0 0.0
        %2228 = vmatpush1.msra.mxu0 0.0
        %2229 = vmatprep.subr.mxu0 0.0
        %2230 = vmatpush1.msra.mxu0 0.0
        %2231 = vmatprep.subr.mxu0 0.0
        %2232 = vmatpush1.msra.mxu0 0.0
        %2233 = vmatprep.subr.mxu0 0.0
        %2234 = vmatpush1.msra.mxu0 0.0
        %2235 = vmatprep.mubr.f32.mxu0 0.0
        %2236 = vmatmul.mubr.f32.gmra.mrb[0].mxu0 %v2153
        %v2237 = vpop.f32.mrb[0].mxu0
        %v2238 = vadd.f32 0.0, %v2237
        %v2239 = vpop.f32.mrb[0].mxu0
        %2240 = vdwg.mxu0
        %v2241 = vadd.f32 %v2037, %v2238
        %v2242 = vld [vmem:[%s10] sm:$0x1]
        %v2243 = vmul.f32 %v2241, %v2241
        %v2244 = vsel %vm431, %v2243, 0.0
        %2245 = vadd.xlane.f32.xlu0 %v2244
        %v2246 = vpop.xlane.xlu0 %2245
        %v2247 = vmul.f32 %v2246, %v435
        %v2248 = vadd.f32 %v2247, 1e-06
        %v2249 = vrsqrt.pop %v2248
        %v2250 = vmul.f32 %v2241, %v2249
        %v2252 = vlaneseq
        %v2253 = vshrl.u32 %v2252, 7
        %v2254 = vsub.s32 0, %v2253
        %v2255 = vrot.slane %v2242, %v2254
        %v2257 = vmul.f32 %v2250, %v2255
        %2258 = vst.msk [vmem:[%s403] sm:$0xff] %vm431, %v2257
        %s2259 = sand.u32 %s275, 1
        %s2260 = scalar_lea.sflag [#allocation4], %s2259
        %s2261 = sand.u32 %s275, 1
        %s2262 = smul.addr %s2261, 8
        %s2263 = scalar_lea.vmem [#allocation5], %s2262
        // Predicated region
        $region69: #{model_wrapper_forward.1} parent=63 // pred_check
          %p2264 = pneg %p285
        $region70: #{model_wrapper_forward.1} parent=63 // pred_check_branch
          %2266 = sbr.rel (%p2264) target = $region72
        $region71: #{model_wrapper_forward.1} parent=63 // pred_region
          %s2268 = ssub.s32 128, 128
          %2269 = vsyncadd %s2260, %s2268
          %s2270 = smul.addr %s26, 128
          %s2271 = scalar_lea.hbm %s11, %s2270
          %s2273 = sshll.u32 %s2263, 4
          %s2274 = int_to_ptr.vmem [resolvable:$true] %s2273
          %2276 = dma.vmem_to_hbm [thread:$0]  %s2274, 128, %s2271, %s2260
        $region72: #{model_wrapper_forward.1} parent=63 // pred_fallthru
          _
      $region64: #{model_wrapper_forward.1} parent=5 // pred_fallthru
        _
      %p2277 = scmp.le.s32.totalorder 2, %s21
      // Predicated region
      $region73: #{model_wrapper_forward.1} parent=5 // pred_check
        %p2278 = pneg %p2277
      $region74: #{model_wrapper_forward.1} parent=5 // pred_check_branch
        %2280 = sbr.rel (%p2278) target = $region76
      $region75: #{model_wrapper_forward.1} parent=5 // pred_region
        %s2281 = ssub.s32 %s21, 2
        // Predicated region
        $region77: #{model_wrapper_forward.1} parent=75 // pred_check
          %p2282 = pneg %p291
        $region78: #{model_wrapper_forward.1} parent=75 // pred_check_branch
          %2284 = sbr.rel (%p2282) target = $region80
        $region79: #{model_wrapper_forward.1} parent=75 // pred_region
          %s2285 = sand.u32 %s276, 1
          %s2286 = scalar_lea.sflag [#allocation4], %s2285
          %s2287 = sand.u32 %s276, 1
          %s2288 = smul.addr %s2287, 8
          %s2289 = scalar_lea.vmem [#allocation5], %s2288
          %2290 = dma.done %s2286, 128
        $region80: #{model_wrapper_forward.1} parent=75 // pred_fallthru
          _
      $region76: #{model_wrapper_forward.1} parent=5 // pred_fallthru
        _
    $region6: #{model_wrapper_forward.1} parent=1 // loop_footer
      %s25 = sadd.s32 1, %s21
    $region7: #{model_wrapper_forward.1} parent=1 // loop_footer_branch
      %20 = sbr.rel target = $region3
    $region8: #{model_wrapper_forward.1} parent=1 // loop_exit
      _
    %2291 = vsyncpa [#allocation3], 1
    %s2292 = scalar_lea.sflag [#allocation3], 1
    %2293 = vsyncpa %s2292, 1
    %2294 = vsyncpa [#allocation4], 1
    %s2295 = scalar_lea.sflag [#allocation4], 1
    %2296 = vsyncpa %s2295, 1

</llo_original>
